<compile_context>
chip_gen: v5e
topology: v5e:2x2
jax: 0.10.0
libtpu: 0.0.40
codegen_flags: <defaults>
</compile_context>

<pallas_src>
import functools

import jax
import jax.numpy as jnp
import numpy as np
from jax import lax
from jax.experimental import pallas as pl
from jax.experimental.pallas import tpu as pltpu

IN_DIM = 1
HIDDEN = 16
OUT_DIM = 1
BN_EPS = 1e-5

# Every (N,16)/(N,4)/(N,1) f32 temporary is stored with the minor dim padded to
# 128 lanes (512 B per node per live temp); ~8 live temps (h1, h2, z, xs, the
# aggregation scratch, node slab, BN temporaries) -> budget 4 KiB per node.
ACT_BYTES_PER_NODE = 4096


def _round_up(x, m):
    return (x + m - 1) // m * m


def _vmem_capacity_bytes():
    """Physical VMEM per core; conservative (v7x-sized) fallback if unknown."""
    try:
        info = pltpu.get_tpu_info()
    except Exception:
        return 64 << 20
    for name in ("vmem_capacity_bytes", "vmem_size_bytes", "vmem_bytes"):
        val = getattr(info, name, None)
        if val:
            return int(val)
    return 64 << 20


def explainer_kernel(node_ref, w_ref, p_ref, a_hbm, out_ref,
                     abuf, sem, agg_ref, *,
                     n_valid, row_tile, graph_norm, batch_norm, residual):
    n_pad = agg_ref.shape[0]
    num_tiles = n_pad // row_tile

    node = node_ref[...]                 # (n_pad, 4) f32 packed per-node scalars
    h0 = node[:, 0:1]                    # input features
    sn = node[:, 1:2]                    # snorm_n
    s_in = node[:, 2:3]                  # rsqrt(in-degree)   (row scale after A)
    s_out = node[:, 3:4]                 # rsqrt(out-degree)  (col scale before A)

    w = w_ref[...]                       # (3, 16, 16) weight slab (padded)
    p = p_ref[...]                       # (3, 3, 16)  [bias, gamma, beta] slab

    # BatchNorm batch statistics must ignore padded rows (padding exists only
    # to make N a multiple of the streaming row tile).
    padded = n_pad > n_valid
    if padded:
        row_ids = lax.broadcasted_iota(jnp.int32, (n_pad, 1), 0)
        valid = (row_ids < n_valid).astype(jnp.float32)
    inv_n = 1.0 / float(n_valid)

    def batchnorm(x, gamma, beta):
        # nn.BatchNorm1d, training mode: per-feature batch mean / biased var
        # over the n_valid real nodes only.
        xm = x * valid if padded else x
        mu = jnp.sum(xm, axis=0, keepdims=True) * inv_n
        d = x - mu
        sq = d * d * valid if padded else d * d
        var = jnp.sum(sq, axis=0, keepdims=True) * inv_n
        return gamma * d * lax.rsqrt(var + BN_EPS) + beta

    def start_dma(t, slot):
        r0 = pl.multiple_of(t * row_tile, row_tile)
        pltpu.make_async_copy(a_hbm.at[pl.ds(r0, row_tile), :],
                              abuf.at[slot], sem.at[slot]).start()

    def wait_dma(slot):
        pltpu.make_async_copy(a_hbm.at[pl.ds(0, row_tile), :],
                              abuf.at[slot], sem.at[slot]).wait()

    def aggregate(x):
        # A_hat @ x == s_in * (A @ (s_out * x)).  A is streamed from HBM as
        # int8 row tiles (double-buffered), upcast to bf16 per tile on the VPU,
        # and the dot runs bf16 x bf16 on the MXU with f32 accumulation.
        xs = (x * s_out).astype(jnp.bfloat16)        # (n_pad, 16) bf16
        start_dma(0, 0)

        @pl.loop(0, num_tiles)
        def _(t):
            slot = t & 1
            wait_dma(slot)

            @pl.when(t + 1 < num_tiles)
            def _():
                start_dma(t + 1, 1 - slot)

            a_tile = abuf[slot].astype(jnp.float32).astype(jnp.bfloat16)
            r0 = pl.multiple_of(t * row_tile, row_tile)
            agg_ref[pl.ds(r0, row_tile), :] = jnp.dot(
                a_tile, xs, preferred_element_type=jnp.float32)

        return s_in * agg_ref[...]

    def post(z, layer, use_act):
        b, gamma, beta = p[layer, 0:1, :], p[layer, 1:2, :], p[layer, 2:3, :]
        z = z + b
        if graph_norm:
            z = z * sn
        if batch_norm:
            z = batchnorm(z, gamma, beta)
        if use_act:
            z = jnp.maximum(z, 0.0)
        return z                         # dropout(p=0.0) is the identity

    # Layer 1 (1 -> 16): reassociate so the K=1 outer-product matmul becomes a
    # VPU broadcast multiply, leaving only the streamed A pass on the MXU.
    w1_row = w[0, 0:1, :]                                    # (1, 16)
    h1 = post(aggregate(h0 * w1_row), 0, use_act=True)

    # Layer 2 (16 -> 16), residual.
    z2 = jnp.dot(aggregate(h1), w[1], preferred_element_type=jnp.float32)
    h2 = post(z2, 1, use_act=True)
    if residual:
        h2 = h1 + h2

    # Layer 3 (16 -> 1): W padded to (16, 16), only column 0 meaningful (padded
    # columns are exactly zero through bias/BN/beta), no activation.
    z3 = jnp.dot(aggregate(h2), w[2], preferred_element_type=jnp.float32)
    h3 = post(z3, 2, use_act=False)[:, 0:1]

    # mean(h1) + mean(h2) as a single XLU row-sum; mean(h3, axis=1) over a
    # width-1 array is the identity.
    means = jnp.sum(h1 + h2, axis=-1, keepdims=True) * (1.0 / HIDDEN)

    out_ref[...] = jnp.maximum(h0 + means + h3, 0.0)


def _pack_params(params):
    w_slab = jnp.zeros((3, HIDDEN, HIDDEN), jnp.float32)
    w_slab = w_slab.at[0, :IN_DIM, :].set(params["w1"])
    w_slab = w_slab.at[1].set(params["w2"])
    w_slab = w_slab.at[2, :, :OUT_DIM].set(params["w3"])

    p_slab = jnp.zeros((3, 3, HIDDEN), jnp.float32)
    p_slab = p_slab.at[0, 0, :].set(params["b1"][0])
    p_slab = p_slab.at[0, 1, :].set(params["g1"][0])
    p_slab = p_slab.at[0, 2, :].set(params["be1"][0])
    p_slab = p_slab.at[1, 0, :].set(params["b2"][0])
    p_slab = p_slab.at[1, 1, :].set(params["g2"][0])
    p_slab = p_slab.at[1, 2, :].set(params["be2"][0])
    p_slab = p_slab.at[2, 0, :OUT_DIM].set(params["b3"][0])
    p_slab = p_slab.at[2, 1, :OUT_DIM].set(params["g3"][0])
    p_slab = p_slab.at[2, 2, :OUT_DIM].set(params["be3"][0])
    return w_slab, p_slab


def explainer_forward(adj, h, snorm_n, params, *,
                      graph_norm=True, batch_norm=True, residual=True,
                      row_tile=None):
    n = adj.shape[0]
    adj = adj.astype(jnp.float32)

    # --- generation-aware VMEM budget -------------------------------------
    cap = _vmem_capacity_bytes()                  # 128 MiB (v5e/v6e), 64 MiB (v7x)
    ceiling = cap - (8 << 20)                     # never request more than this
    budget = min(int(ceiling * 0.75), 96 << 20)   # tile-selection working set

    n_r = _round_up(n, 32)
    if row_tile is None:
        avail = budget - ACT_BYTES_PER_NODE * n_r - (2 << 20)
        t_max = max(avail // (8 * n_r), 32)       # 8 B/elem: i8 dbuf + upcast tile
        row_tile = int(min(n_r, 512, (t_max // 32) * 32))
        row_tile = max(row_tile, 32)
    else:
        row_tile = max(32, _round_up(int(row_tile), 32))
    n_pad = _round_up(n, row_tile)
    pad_n = n_pad - n

    # --- pack operands ------------------------------------------------------
    # Degree scale vectors: one fused XLA pass over the caller's adjacency
    # (the reductions fuse with the f32->int8 cast); no normalized f32 (N,N)
    # matrix is ever materialized.  DGL clamps degrees to >= 1.
    deg_in = jnp.maximum(jnp.sum(adj, axis=1, keepdims=True), 1.0)       # (n,1)
    deg_out = jnp.maximum(jnp.sum(adj, axis=0, keepdims=True), 1.0).T    # (n,1)
    node = jnp.concatenate(
        [h, snorm_n, lax.rsqrt(deg_in), lax.rsqrt(deg_out)], axis=1)     # (n,4)
    a_i8 = adj.astype(jnp.int8)     # exact for a 0/1 (unweighted) adjacency
    if pad_n:
        node = jnp.pad(node, ((0, pad_n), (0, 0)))
        a_i8 = jnp.pad(a_i8, ((0, pad_n), (0, pad_n)))

    w_slab, p_slab = _pack_params(params)

    # --- VMEM estimate (lane-padding aware) & compiler params ---------------
    est = (8 * row_tile * n_pad                # int8 double buffer + upcast tile
           + ACT_BYTES_PER_NODE * n_pad        # 128-lane-padded f32 temporaries
           + (2 << 20))                        # weights / compiler slack
    compiler_params = None
    if est > (16 << 20):
        compiler_params = pltpu.CompilerParams(
            vmem_limit_bytes=int(min(ceiling, int(est * 1.25))))

    kernel = functools.partial(
        explainer_kernel, n_valid=n, row_tile=row_tile,
        graph_norm=graph_norm, batch_norm=batch_norm, residual=residual)

    vmem = pl.BlockSpec(memory_space=pltpu.MemorySpace.VMEM)
    out = pl.pallas_call(
        kernel,
        out_shape=jax.ShapeDtypeStruct((n_pad, 1), jnp.float32),
        in_specs=[vmem, vmem, vmem, pl.BlockSpec(memory_space=pl.ANY)],
        out_specs=vmem,
        scratch_shapes=[
            pltpu.VMEM((2, row_tile, n_pad), jnp.int8),   # A row-tile dbl buffer
            pltpu.SemaphoreType.DMA((2,)),
            pltpu.VMEM((n_pad, HIDDEN), jnp.float32),     # aggregation scratch
        ],
        compiler_params=compiler_params,
    )(node, w_slab, p_slab, a_i8)
    return out[:n]


def explainer_reference(adj, h, snorm_n, params, *,
                        graph_norm=True, batch_norm=True, residual=True):
    # Pure-JAX f32 reference (exact module semantics).
    deg_in = jnp.maximum(jnp.sum(adj, axis=1, keepdims=True), 1.0)
    deg_out = jnp.maximum(jnp.sum(adj, axis=0, keepdims=True), 1.0)
    a_hat = adj * lax.rsqrt(deg_in) * lax.rsqrt(deg_out)

    def bn(x, g, b):
        mu = jnp.mean(x, axis=0, keepdims=True)
        var = jnp.mean((x - mu) ** 2, axis=0, keepdims=True)
        return g * (x - mu) * lax.rsqrt(var + BN_EPS) + b

    def layer(x, w, b, g, be, act, res):
        z = (a_hat @ x) @ w + b
        if graph_norm:
            z = z * snorm_n
        if batch_norm:
            z = bn(z, g, be)
        if act:
            z = jnp.maximum(z, 0.0)
        if res:
            z = x + z
        return z

    h1 = layer(h, params["w1"], params["b1"], params["g1"], params["be1"], True, False)
    h2 = layer(h1, params["w2"], params["b2"], params["g2"], params["be2"], True, residual)
    h3 = layer(h2, params["w3"], params["b3"], params["g3"], params["be3"], False, False)
    acc = (h + jnp.mean(h1, axis=1, keepdims=True)
             + jnp.mean(h2, axis=1, keepdims=True)
             + jnp.mean(h3, axis=1, keepdims=True))
    return jnp.maximum(acc, 0.0)


def make_params(key):
    # PyTorch-style uniform(-1/sqrt(fan_in), 1/sqrt(fan_in)) init; BN gamma=1, beta=0.
    ks = jax.random.split(key, 6)

    def lin(kw, kb, fan_in, fan_out):
        bound = 1.0 / np.sqrt(fan_in)
        w = jax.random.uniform(kw, (fan_in, fan_out), jnp.float32, -bound, bound)
        b = jax.random.uniform(kb, (1, fan_out), jnp.float32, -bound, bound)
        return w, b

    w1, b1 = lin(ks[0], ks[1], IN_DIM, HIDDEN)
    w2, b2 = lin(ks[2], ks[3], HIDDEN, HIDDEN)
    w3, b3 = lin(ks[4], ks[5], HIDDEN, OUT_DIM)
    return {
        "w1": w1, "b1": b1, "g1": jnp.ones((1, HIDDEN), jnp.float32), "be1": jnp.zeros((1, HIDDEN), jnp.float32),
        "w2": w2, "b2": b2, "g2": jnp.ones((1, HIDDEN), jnp.float32), "be2": jnp.zeros((1, HIDDEN), jnp.float32),
        "w3": w3, "b3": b3, "g3": jnp.ones((1, OUT_DIM), jnp.float32), "be3": jnp.zeros((1, OUT_DIM), jnp.float32),
    }


if __name__ == "__main__":
    # MNIST-superpixel-sized graph; N=75 is not 8/32-aligned, so this also
    # exercises the node padding + masked BatchNorm statistics.
    N = 75
    key = jax.random.PRNGKey(0)
    k_adj, k_h, k_w = jax.random.split(key, 3)

    # Deterministic random symmetric 0/1 adjacency with self-loops.
    u = jax.random.uniform(k_adj, (N, N))
    adj = ((u + u.T) > 1.5).astype(jnp.float32)
    adj = jnp.maximum(adj, jnp.eye(N, dtype=jnp.float32))

    h = jax.random.normal(k_h, (N, IN_DIM), jnp.float32)
    snorm_n = jnp.full((N, 1), 1.0 / np.sqrt(N), jnp.float32)
    params = make_params(k_w)

    ref = jax.block_until_ready(explainer_reference(adj, h, snorm_n, params))

    # Auto tile choice (single row tile here: one DMA, same code path).
    out = jax.block_until_ready(explainer_forward(adj, h, snorm_n, params))
    assert out.shape == (N, 1)
    # Tolerance accounts for bf16 aggregation operands (f32 accumulation);
    # the 0/1 adjacency itself is exact through int8 -> bf16.
    assert np.allclose(np.asarray(out), np.asarray(ref), rtol=1e-2, atol=1e-2), \
        f"max abs diff {np.max(np.abs(np.asarray(out) - np.asarray(ref)))}"

    # Forced small row tile: exercises the multi-tile double-buffered
    # HBM -> VMEM streaming pipeline (3 tiles of 32 rows).
    out_s = jax.block_until_ready(
        explainer_forward(adj, h, snorm_n, params, row_tile=32))
    assert np.allclose(np.asarray(out_s), np.asarray(ref), rtol=1e-2, atol=1e-2), \
        f"max abs diff {np.max(np.abs(np.asarray(out_s) - np.asarray(ref)))}"

    print("KERNEL_OK")
</pallas_src>

<mosaic_0001>
module attributes {stable_mosaic.version = 11 : i64} {
  func.func @explainer_kernel(%arg0: memref<96x4xf32, #tpu.memory_space<vmem>>, %arg1: memref<3x16x16xf32, #tpu.memory_space<vmem>>, %arg2: memref<3x3x16xf32, #tpu.memory_space<vmem>>, %arg3: memref<96x96xi8, #tpu.memory_space<any>>, %arg4: memref<96x1xf32, #tpu.memory_space<vmem>>, %arg5: memref<2x96x96xi8, #tpu.memory_space<vmem>>, %arg6: memref<2x!tpu.dma_semaphore, #tpu.memory_space<semaphore_mem>>, %arg7: memref<96x16xf32, #tpu.memory_space<vmem>>) attributes {dimension_semantics = [], scalar_prefetch = 0 : i64, scratch_operands = 3 : i64, tpu.core_type = #tpu.core_type<tc>} {
    %c0 = arith.constant 0 : index
    %c0_0 = arith.constant 0 : index
    %0 = vector.load %arg0[%c0, %c0_0] : memref<96x4xf32, #tpu.memory_space<vmem>>, vector<96x4xf32>
    %1 = vector.extract_strided_slice %0 {offsets = [0, 0], sizes = [96, 1], strides = [1, 1]} : vector<96x4xf32> to vector<96x1xf32>
    %2 = vector.extract_strided_slice %0 {offsets = [0, 1], sizes = [96, 1], strides = [1, 1]} : vector<96x4xf32> to vector<96x1xf32>
    %3 = vector.extract_strided_slice %0 {offsets = [0, 2], sizes = [96, 1], strides = [1, 1]} : vector<96x4xf32> to vector<96x1xf32>
    %4 = vector.extract_strided_slice %0 {offsets = [0, 3], sizes = [96, 1], strides = [1, 1]} : vector<96x4xf32> to vector<96x1xf32>
    %c0_1 = arith.constant 0 : index
    %c0_2 = arith.constant 0 : index
    %c0_3 = arith.constant 0 : index
    %5 = vector.load %arg1[%c0_1, %c0_2, %c0_3] : memref<3x16x16xf32, #tpu.memory_space<vmem>>, vector<3x16x16xf32>
    %c0_4 = arith.constant 0 : index
    %c0_5 = arith.constant 0 : index
    %c0_6 = arith.constant 0 : index
    %6 = vector.load %arg2[%c0_4, %c0_5, %c0_6] : memref<3x3x16xf32, #tpu.memory_space<vmem>>, vector<3x3x16xf32>
    %7 = tpu.iota {dimensions = array<i32: 0>} : vector<96x1xi32>
    %c75_i32 = arith.constant 75 : i32
    %8 = vector.broadcast %c75_i32 : i32 to vector<96x1xi32>
    %9 = arith.cmpi slt, %7, %8 : vector<96x1xi32>
    %10 = arith.extui %9 : vector<96x1xi1> to vector<96x1xi32>
    %11 = arith.sitofp %10 : vector<96x1xi32> to vector<96x1xf32>
    %12 = vector.extract_strided_slice %5 {offsets = [0, 0, 0], sizes = [1, 1, 16], strides = [1, 1, 1]} : vector<3x16x16xf32> to vector<1x1x16xf32>
    %13 = vector.shape_cast %12 : vector<1x1x16xf32> to vector<1x16xf32>
    %14 = vector.broadcast %1 : vector<96x1xf32> to vector<96x16xf32>
    %15 = vector.broadcast %13 : vector<1x16xf32> to vector<96x16xf32>
    %16 = arith.mulf %14, %15 : vector<96x16xf32>
    %17 = vector.broadcast %4 : vector<96x1xf32> to vector<96x16xf32>
    %18 = arith.mulf %16, %17 : vector<96x16xf32>
    %19 = arith.truncf %18 : vector<96x16xf32> to vector<96x16xbf16>
    %c0_i32 = arith.constant 0 : i32
    %20 = tpu.assume_multiple %c0_i32, 96 : i32
    %c0_i32_7 = arith.constant 0 : i32
    %c0_i32_8 = arith.constant 0 : i32
    %c0_i32_9 = arith.constant 0 : i32
    %21 = tpu.memref_slice %arg3[%20, %c0_i32_9] : memref<96x96xi8, #tpu.memory_space<any>> -> memref<96x96xi8, #tpu.memory_space<any>>
    %c0_i32_10 = arith.constant 0 : i32
    %c0_i32_11 = arith.constant 0 : i32
    %22 = tpu.memref_slice %arg5[%c0_i32_7, %c0_i32_10, %c0_i32_11] : memref<2x96x96xi8, #tpu.memory_space<vmem>> -> memref<1x96x96xi8, #tpu.memory_space<vmem>>
    %23 = tpu.memref_squeeze %22 : memref<1x96x96xi8, #tpu.memory_space<vmem>> -> memref<96x96xi8, #tpu.memory_space<vmem>>
    %24 = tpu.memref_slice %arg6[%c0_i32_8] : memref<2x!tpu.dma_semaphore, #tpu.memory_space<semaphore_mem>> -> memref<1x!tpu.dma_semaphore, #tpu.memory_space<semaphore_mem>>
    %25 = tpu.memref_squeeze %24 : memref<1x!tpu.dma_semaphore, #tpu.memory_space<semaphore_mem>> -> memref<!tpu.dma_semaphore, #tpu.memory_space<semaphore_mem>>
    tpu.enqueue_dma source(%21 : memref<96x96xi8, #tpu.memory_space<any>>) target(%23 : memref<96x96xi8, #tpu.memory_space<vmem>>) target_semaphore(%25 : memref<!tpu.dma_semaphore, #tpu.memory_space<semaphore_mem>>)
    %c0_i32_12 = arith.constant 0 : i32
    %c1_i32 = arith.constant 1 : i32
    %26 = arith.muli %c0_i32_12, %c1_i32 : i32
    %c0_i32_13 = arith.constant 0 : i32
    %27 = arith.addi %c0_i32_13, %26 : i32
    %c1_i32_14 = arith.constant 1 : i32
    %28 = arith.andi %27, %c1_i32_14 : i32
    %c0_i32_15 = arith.constant 0 : i32
    %c0_i32_16 = arith.constant 0 : i32
    %29 = tpu.memref_slice %arg3[%c0_i32_15, %c0_i32_16] : memref<96x96xi8, #tpu.memory_space<any>> -> memref<96x96xi8, #tpu.memory_space<any>>
    %c0_i32_17 = arith.constant 0 : i32
    %c0_i32_18 = arith.constant 0 : i32
    %30 = tpu.memref_slice %arg5[%28, %c0_i32_17, %c0_i32_18] : memref<2x96x96xi8, #tpu.memory_space<vmem>> -> memref<1x96x96xi8, #tpu.memory_space<vmem>>
    %31 = tpu.memref_squeeze %30 : memref<1x96x96xi8, #tpu.memory_space<vmem>> -> memref<96x96xi8, #tpu.memory_space<vmem>>
    %32 = tpu.memref_slice %arg6[%28] : memref<2x!tpu.dma_semaphore, #tpu.memory_space<semaphore_mem>> -> memref<1x!tpu.dma_semaphore, #tpu.memory_space<semaphore_mem>>
    %33 = tpu.memref_squeeze %32 : memref<1x!tpu.dma_semaphore, #tpu.memory_space<semaphore_mem>> -> memref<!tpu.dma_semaphore, #tpu.memory_space<semaphore_mem>>
    tpu.wait_dma2 semaphore(%33 : memref<!tpu.dma_semaphore, #tpu.memory_space<semaphore_mem>>) src(%29 : memref<96x96xi8, #tpu.memory_space<any>>) dst(%31 : memref<96x96xi8, #tpu.memory_space<vmem>>)
    %c1_i32_19 = arith.constant 1 : i32
    %34 = arith.addi %27, %c1_i32_19 : i32
    %c1_i32_20 = arith.constant 1 : i32
    %35 = arith.cmpi slt, %34, %c1_i32_20 : i32
    %36 = arith.extui %35 : i1 to i32
    %c0_i32_21 = arith.constant 0 : i32
    %37 = arith.cmpi ne, %36, %c0_i32_21 : i32
    scf.if %37 {
      %c1_i32_102 = arith.constant 1 : i32
      %243 = arith.addi %27, %c1_i32_102 : i32
      %c1_i32_103 = arith.constant 1 : i32
      %244 = arith.subi %c1_i32_103, %28 : i32
      %c96_i32_104 = arith.constant 96 : i32
      %245 = arith.muli %243, %c96_i32_104 : i32
      %246 = tpu.assume_multiple %245, 96 : i32
      %c0_i32_105 = arith.constant 0 : i32
      %247 = tpu.memref_slice %arg3[%246, %c0_i32_105] : memref<96x96xi8, #tpu.memory_space<any>> -> memref<96x96xi8, #tpu.memory_space<any>>
      %c0_i32_106 = arith.constant 0 : i32
      %c0_i32_107 = arith.constant 0 : i32
      %248 = tpu.memref_slice %arg5[%244, %c0_i32_106, %c0_i32_107] : memref<2x96x96xi8, #tpu.memory_space<vmem>> -> memref<1x96x96xi8, #tpu.memory_space<vmem>>
      %249 = tpu.memref_squeeze %248 : memref<1x96x96xi8, #tpu.memory_space<vmem>> -> memref<96x96xi8, #tpu.memory_space<vmem>>
      %250 = tpu.memref_slice %arg6[%244] : memref<2x!tpu.dma_semaphore, #tpu.memory_space<semaphore_mem>> -> memref<1x!tpu.dma_semaphore, #tpu.memory_space<semaphore_mem>>
      %251 = tpu.memref_squeeze %250 : memref<1x!tpu.dma_semaphore, #tpu.memory_space<semaphore_mem>> -> memref<!tpu.dma_semaphore, #tpu.memory_space<semaphore_mem>>
      tpu.enqueue_dma source(%247 : memref<96x96xi8, #tpu.memory_space<any>>) target(%249 : memref<96x96xi8, #tpu.memory_space<vmem>>) target_semaphore(%251 : memref<!tpu.dma_semaphore, #tpu.memory_space<semaphore_mem>>)
    } else {
    }
    %38 = arith.index_cast %28 : i32 to index
    %c0_22 = arith.constant 0 : index
    %c0_23 = arith.constant 0 : index
    %39 = vector.load %arg5[%38, %c0_22, %c0_23] : memref<2x96x96xi8, #tpu.memory_space<vmem>>, vector<1x96x96xi8>
    %40 = vector.shape_cast %39 : vector<1x96x96xi8> to vector<96x96xi8>
    %41 = arith.sitofp %40 : vector<96x96xi8> to vector<96x96xf32>
    %42 = arith.truncf %41 : vector<96x96xf32> to vector<96x96xbf16>
    %c96_i32 = arith.constant 96 : i32
    %43 = arith.muli %27, %c96_i32 : i32
    %44 = tpu.assume_multiple %43, 96 : i32
    %cst = arith.constant dense<0.000000e+00> : vector<96x16xf32>
    %45 = tpu.matmul %42, %19, %cst {dimension_numbers = #tpu.dot_dimension_numbers<[1], [0], [0], [1], [0, 0, 1, 1], [], []>} : vector<96x96xbf16>, vector<96x16xbf16>, vector<96x16xf32> -> vector<96x16xf32>
    %46 = arith.index_cast %44 : i32 to index
    %c0_24 = arith.constant 0 : index
    %47 = vector.load %arg7[%46, %c0_24] : memref<96x16xf32, #tpu.memory_space<vmem>>, vector<96x16xf32>
    tpu.vector_store %arg7[%46, %c0_24], %45 {strides = array<i32>} : memref<96x16xf32, #tpu.memory_space<vmem>>, vector<96x16xf32>,
    %c1_i32_25 = arith.constant 1 : i32
    %c0_26 = arith.constant 0 : index
    %c0_27 = arith.constant 0 : index
    %48 = vector.load %arg7[%c0_26, %c0_27] : memref<96x16xf32, #tpu.memory_space<vmem>>, vector<96x16xf32>
    %49 = vector.broadcast %3 : vector<96x1xf32> to vector<96x16xf32>
    %50 = arith.mulf %49, %48 : vector<96x16xf32>
    %51 = vector.extract_strided_slice %6 {offsets = [0, 0, 0], sizes = [1, 1, 16], strides = [1, 1, 1]} : vector<3x3x16xf32> to vector<1x1x16xf32>
    %52 = vector.shape_cast %51 : vector<1x1x16xf32> to vector<1x16xf32>
    %53 = vector.extract_strided_slice %6 {offsets = [0, 1, 0], sizes = [1, 1, 16], strides = [1, 1, 1]} : vector<3x3x16xf32> to vector<1x1x16xf32>
    %54 = vector.shape_cast %53 : vector<1x1x16xf32> to vector<1x16xf32>
    %55 = vector.extract_strided_slice %6 {offsets = [0, 2, 0], sizes = [1, 1, 16], strides = [1, 1, 1]} : vector<3x3x16xf32> to vector<1x1x16xf32>
    %56 = vector.shape_cast %55 : vector<1x1x16xf32> to vector<1x16xf32>
    %57 = vector.broadcast %52 : vector<1x16xf32> to vector<96x16xf32>
    %58 = arith.addf %50, %57 : vector<96x16xf32>
    %59 = vector.broadcast %2 : vector<96x1xf32> to vector<96x16xf32>
    %60 = arith.mulf %58, %59 : vector<96x16xf32>
    %61 = vector.broadcast %11 : vector<96x1xf32> to vector<96x16xf32>
    %62 = arith.mulf %60, %61 : vector<96x16xf32>
    %cst_28 = arith.constant dense<0.000000e+00> : vector<16xf32>
    %63 = vector.multi_reduction <add>, %62, %cst_28 [0] : vector<96x16xf32> to vector<16xf32>
    %64 = vector.shape_cast %63 : vector<16xf32> to vector<1x16xf32>
    %cst_29 = arith.constant 0.0133333337 : f32
    %65 = vector.broadcast %cst_29 : f32 to vector<1x16xf32>
    %66 = arith.mulf %64, %65 : vector<1x16xf32>
    %67 = vector.broadcast %66 : vector<1x16xf32> to vector<96x16xf32>
    %68 = arith.subf %60, %67 : vector<96x16xf32>
    %69 = arith.mulf %68, %68 : vector<96x16xf32>
    %70 = vector.broadcast %11 : vector<96x1xf32> to vector<96x16xf32>
    %71 = arith.mulf %69, %70 : vector<96x16xf32>
    %cst_30 = arith.constant dense<0.000000e+00> : vector<16xf32>
    %72 = vector.multi_reduction <add>, %71, %cst_30 [0] : vector<96x16xf32> to vector<16xf32>
    %73 = vector.shape_cast %72 : vector<16xf32> to vector<1x16xf32>
    %cst_31 = arith.constant 0.0133333337 : f32
    %74 = vector.broadcast %cst_31 : f32 to vector<1x16xf32>
    %75 = arith.mulf %73, %74 : vector<1x16xf32>
    %76 = vector.broadcast %54 : vector<1x16xf32> to vector<96x16xf32>
    %77 = arith.mulf %76, %68 : vector<96x16xf32>
    %cst_32 = arith.constant 9.99999974E-6 : f32
    %78 = vector.broadcast %cst_32 : f32 to vector<1x16xf32>
    %79 = arith.addf %75, %78 : vector<1x16xf32>
    %80 = math.rsqrt %79 : vector<1x16xf32>
    %81 = vector.broadcast %80 : vector<1x16xf32> to vector<96x16xf32>
    %82 = arith.mulf %77, %81 : vector<96x16xf32>
    %83 = vector.broadcast %56 : vector<1x16xf32> to vector<96x16xf32>
    %84 = arith.addf %82, %83 : vector<96x16xf32>
    %cst_33 = arith.constant 0.000000e+00 : f32
    %85 = vector.broadcast %cst_33 : f32 to vector<96x16xf32>
    %86 = arith.maximumf %84, %85 : vector<96x16xf32>
    %87 = vector.broadcast %4 : vector<96x1xf32> to vector<96x16xf32>
    %88 = arith.mulf %86, %87 : vector<96x16xf32>
    %89 = arith.truncf %88 : vector<96x16xf32> to vector<96x16xbf16>
    %c0_i32_34 = arith.constant 0 : i32
    %90 = tpu.assume_multiple %c0_i32_34, 96 : i32
    %c0_i32_35 = arith.constant 0 : i32
    %c0_i32_36 = arith.constant 0 : i32
    %c0_i32_37 = arith.constant 0 : i32
    %91 = tpu.memref_slice %arg3[%90, %c0_i32_37] : memref<96x96xi8, #tpu.memory_space<any>> -> memref<96x96xi8, #tpu.memory_space<any>>
    %c0_i32_38 = arith.constant 0 : i32
    %c0_i32_39 = arith.constant 0 : i32
    %92 = tpu.memref_slice %arg5[%c0_i32_35, %c0_i32_38, %c0_i32_39] : memref<2x96x96xi8, #tpu.memory_space<vmem>> -> memref<1x96x96xi8, #tpu.memory_space<vmem>>
    %93 = tpu.memref_squeeze %92 : memref<1x96x96xi8, #tpu.memory_space<vmem>> -> memref<96x96xi8, #tpu.memory_space<vmem>>
    %94 = tpu.memref_slice %arg6[%c0_i32_36] : memref<2x!tpu.dma_semaphore, #tpu.memory_space<semaphore_mem>> -> memref<1x!tpu.dma_semaphore, #tpu.memory_space<semaphore_mem>>
    %95 = tpu.memref_squeeze %94 : memref<1x!tpu.dma_semaphore, #tpu.memory_space<semaphore_mem>> -> memref<!tpu.dma_semaphore, #tpu.memory_space<semaphore_mem>>
    tpu.enqueue_dma source(%91 : memref<96x96xi8, #tpu.memory_space<any>>) target(%93 : memref<96x96xi8, #tpu.memory_space<vmem>>) target_semaphore(%95 : memref<!tpu.dma_semaphore, #tpu.memory_space<semaphore_mem>>)
    %c0_i32_40 = arith.constant 0 : i32
    %c1_i32_41 = arith.constant 1 : i32
    %96 = arith.muli %c0_i32_40, %c1_i32_41 : i32
    %c0_i32_42 = arith.constant 0 : i32
    %97 = arith.addi %c0_i32_42, %96 : i32
    %c1_i32_43 = arith.constant 1 : i32
    %98 = arith.andi %97, %c1_i32_43 : i32
    %c0_i32_44 = arith.constant 0 : i32
    %c0_i32_45 = arith.constant 0 : i32
    %99 = tpu.memref_slice %arg3[%c0_i32_44, %c0_i32_45] : memref<96x96xi8, #tpu.memory_space<any>> -> memref<96x96xi8, #tpu.memory_space<any>>
    %c0_i32_46 = arith.constant 0 : i32
    %c0_i32_47 = arith.constant 0 : i32
    %100 = tpu.memref_slice %arg5[%98, %c0_i32_46, %c0_i32_47] : memref<2x96x96xi8, #tpu.memory_space<vmem>> -> memref<1x96x96xi8, #tpu.memory_space<vmem>>
    %101 = tpu.memref_squeeze %100 : memref<1x96x96xi8, #tpu.memory_space<vmem>> -> memref<96x96xi8, #tpu.memory_space<vmem>>
    %102 = tpu.memref_slice %arg6[%98] : memref<2x!tpu.dma_semaphore, #tpu.memory_space<semaphore_mem>> -> memref<1x!tpu.dma_semaphore, #tpu.memory_space<semaphore_mem>>
    %103 = tpu.memref_squeeze %102 : memref<1x!tpu.dma_semaphore, #tpu.memory_space<semaphore_mem>> -> memref<!tpu.dma_semaphore, #tpu.memory_space<semaphore_mem>>
    tpu.wait_dma2 semaphore(%103 : memref<!tpu.dma_semaphore, #tpu.memory_space<semaphore_mem>>) src(%99 : memref<96x96xi8, #tpu.memory_space<any>>) dst(%101 : memref<96x96xi8, #tpu.memory_space<vmem>>)
    %c1_i32_48 = arith.constant 1 : i32
    %104 = arith.addi %97, %c1_i32_48 : i32
    %c1_i32_49 = arith.constant 1 : i32
    %105 = arith.cmpi slt, %104, %c1_i32_49 : i32
    %106 = arith.extui %105 : i1 to i32
    %c0_i32_50 = arith.constant 0 : i32
    %107 = arith.cmpi ne, %106, %c0_i32_50 : i32
    scf.if %107 {
      %c1_i32_102 = arith.constant 1 : i32
      %243 = arith.addi %97, %c1_i32_102 : i32
      %c1_i32_103 = arith.constant 1 : i32
      %244 = arith.subi %c1_i32_103, %98 : i32
      %c96_i32_104 = arith.constant 96 : i32
      %245 = arith.muli %243, %c96_i32_104 : i32
      %246 = tpu.assume_multiple %245, 96 : i32
      %c0_i32_105 = arith.constant 0 : i32
      %247 = tpu.memref_slice %arg3[%246, %c0_i32_105] : memref<96x96xi8, #tpu.memory_space<any>> -> memref<96x96xi8, #tpu.memory_space<any>>
      %c0_i32_106 = arith.constant 0 : i32
      %c0_i32_107 = arith.constant 0 : i32
      %248 = tpu.memref_slice %arg5[%244, %c0_i32_106, %c0_i32_107] : memref<2x96x96xi8, #tpu.memory_space<vmem>> -> memref<1x96x96xi8, #tpu.memory_space<vmem>>
      %249 = tpu.memref_squeeze %248 : memref<1x96x96xi8, #tpu.memory_space<vmem>> -> memref<96x96xi8, #tpu.memory_space<vmem>>
      %250 = tpu.memref_slice %arg6[%244] : memref<2x!tpu.dma_semaphore, #tpu.memory_space<semaphore_mem>> -> memref<1x!tpu.dma_semaphore, #tpu.memory_space<semaphore_mem>>
      %251 = tpu.memref_squeeze %250 : memref<1x!tpu.dma_semaphore, #tpu.memory_space<semaphore_mem>> -> memref<!tpu.dma_semaphore, #tpu.memory_space<semaphore_mem>>
      tpu.enqueue_dma source(%247 : memref<96x96xi8, #tpu.memory_space<any>>) target(%249 : memref<96x96xi8, #tpu.memory_space<vmem>>) target_semaphore(%251 : memref<!tpu.dma_semaphore, #tpu.memory_space<semaphore_mem>>)
    } else {
    }
    %108 = arith.index_cast %98 : i32 to index
    %c0_51 = arith.constant 0 : index
    %c0_52 = arith.constant 0 : index
    %109 = vector.load %arg5[%108, %c0_51, %c0_52] : memref<2x96x96xi8, #tpu.memory_space<vmem>>, vector<1x96x96xi8>
    %110 = vector.shape_cast %109 : vector<1x96x96xi8> to vector<96x96xi8>
    %111 = arith.sitofp %110 : vector<96x96xi8> to vector<96x96xf32>
    %112 = arith.truncf %111 : vector<96x96xf32> to vector<96x96xbf16>
    %c96_i32_53 = arith.constant 96 : i32
    %113 = arith.muli %97, %c96_i32_53 : i32
    %114 = tpu.assume_multiple %113, 96 : i32
    %cst_54 = arith.constant dense<0.000000e+00> : vector<96x16xf32>
    %115 = tpu.matmul %112, %89, %cst_54 {dimension_numbers = #tpu.dot_dimension_numbers<[1], [0], [0], [1], [0, 0, 1, 1], [], []>} : vector<96x96xbf16>, vector<96x16xbf16>, vector<96x16xf32> -> vector<96x16xf32>
    %116 = arith.index_cast %114 : i32 to index
    %c0_55 = arith.constant 0 : index
    %117 = vector.load %arg7[%116, %c0_55] : memref<96x16xf32, #tpu.memory_space<vmem>>, vector<96x16xf32>
    tpu.vector_store %arg7[%116, %c0_55], %115 {strides = array<i32>} : memref<96x16xf32, #tpu.memory_space<vmem>>, vector<96x16xf32>,
    %c1_i32_56 = arith.constant 1 : i32
    %c0_57 = arith.constant 0 : index
    %c0_58 = arith.constant 0 : index
    %118 = vector.load %arg7[%c0_57, %c0_58] : memref<96x16xf32, #tpu.memory_space<vmem>>, vector<96x16xf32>
    %119 = vector.broadcast %3 : vector<96x1xf32> to vector<96x16xf32>
    %120 = arith.mulf %119, %118 : vector<96x16xf32>
    %121 = vector.extract_strided_slice %5 {offsets = [1, 0, 0], sizes = [1, 16, 16], strides = [1, 1, 1]} : vector<3x16x16xf32> to vector<1x16x16xf32>
    %122 = vector.shape_cast %121 : vector<1x16x16xf32> to vector<16x16xf32>
    %cst_59 = arith.constant dense<0.000000e+00> : vector<96x16xf32>
    %123 = tpu.matmul %120, %122, %cst_59 {dimension_numbers = #tpu.dot_dimension_numbers<[1], [0], [0], [1], [0, 0, 1, 1], [], []>} : vector<96x16xf32>, vector<16x16xf32>, vector<96x16xf32> -> vector<96x16xf32>
    %124 = vector.extract_strided_slice %6 {offsets = [1, 0, 0], sizes = [1, 1, 16], strides = [1, 1, 1]} : vector<3x3x16xf32> to vector<1x1x16xf32>
    %125 = vector.shape_cast %124 : vector<1x1x16xf32> to vector<1x16xf32>
    %126 = vector.extract_strided_slice %6 {offsets = [1, 1, 0], sizes = [1, 1, 16], strides = [1, 1, 1]} : vector<3x3x16xf32> to vector<1x1x16xf32>
    %127 = vector.shape_cast %126 : vector<1x1x16xf32> to vector<1x16xf32>
    %128 = vector.extract_strided_slice %6 {offsets = [1, 2, 0], sizes = [1, 1, 16], strides = [1, 1, 1]} : vector<3x3x16xf32> to vector<1x1x16xf32>
    %129 = vector.shape_cast %128 : vector<1x1x16xf32> to vector<1x16xf32>
    %130 = vector.broadcast %125 : vector<1x16xf32> to vector<96x16xf32>
    %131 = arith.addf %123, %130 : vector<96x16xf32>
    %132 = vector.broadcast %2 : vector<96x1xf32> to vector<96x16xf32>
    %133 = arith.mulf %131, %132 : vector<96x16xf32>
    %134 = vector.broadcast %11 : vector<96x1xf32> to vector<96x16xf32>
    %135 = arith.mulf %133, %134 : vector<96x16xf32>
    %cst_60 = arith.constant dense<0.000000e+00> : vector<16xf32>
    %136 = vector.multi_reduction <add>, %135, %cst_60 [0] : vector<96x16xf32> to vector<16xf32>
    %137 = vector.shape_cast %136 : vector<16xf32> to vector<1x16xf32>
    %cst_61 = arith.constant 0.0133333337 : f32
    %138 = vector.broadcast %cst_61 : f32 to vector<1x16xf32>
    %139 = arith.mulf %137, %138 : vector<1x16xf32>
    %140 = vector.broadcast %139 : vector<1x16xf32> to vector<96x16xf32>
    %141 = arith.subf %133, %140 : vector<96x16xf32>
    %142 = arith.mulf %141, %141 : vector<96x16xf32>
    %143 = vector.broadcast %11 : vector<96x1xf32> to vector<96x16xf32>
    %144 = arith.mulf %142, %143 : vector<96x16xf32>
    %cst_62 = arith.constant dense<0.000000e+00> : vector<16xf32>
    %145 = vector.multi_reduction <add>, %144, %cst_62 [0] : vector<96x16xf32> to vector<16xf32>
    %146 = vector.shape_cast %145 : vector<16xf32> to vector<1x16xf32>
    %cst_63 = arith.constant 0.0133333337 : f32
    %147 = vector.broadcast %cst_63 : f32 to vector<1x16xf32>
    %148 = arith.mulf %146, %147 : vector<1x16xf32>
    %149 = vector.broadcast %127 : vector<1x16xf32> to vector<96x16xf32>
    %150 = arith.mulf %149, %141 : vector<96x16xf32>
    %cst_64 = arith.constant 9.99999974E-6 : f32
    %151 = vector.broadcast %cst_64 : f32 to vector<1x16xf32>
    %152 = arith.addf %148, %151 : vector<1x16xf32>
    %153 = math.rsqrt %152 : vector<1x16xf32>
    %154 = vector.broadcast %153 : vector<1x16xf32> to vector<96x16xf32>
    %155 = arith.mulf %150, %154 : vector<96x16xf32>
    %156 = vector.broadcast %129 : vector<1x16xf32> to vector<96x16xf32>
    %157 = arith.addf %155, %156 : vector<96x16xf32>
    %cst_65 = arith.constant 0.000000e+00 : f32
    %158 = vector.broadcast %cst_65 : f32 to vector<96x16xf32>
    %159 = arith.maximumf %157, %158 : vector<96x16xf32>
    %160 = arith.addf %86, %159 : vector<96x16xf32>
    %161 = vector.broadcast %4 : vector<96x1xf32> to vector<96x16xf32>
    %162 = arith.mulf %160, %161 : vector<96x16xf32>
    %163 = arith.truncf %162 : vector<96x16xf32> to vector<96x16xbf16>
    %c0_i32_66 = arith.constant 0 : i32
    %164 = tpu.assume_multiple %c0_i32_66, 96 : i32
    %c0_i32_67 = arith.constant 0 : i32
    %c0_i32_68 = arith.constant 0 : i32
    %c0_i32_69 = arith.constant 0 : i32
    %165 = tpu.memref_slice %arg3[%164, %c0_i32_69] : memref<96x96xi8, #tpu.memory_space<any>> -> memref<96x96xi8, #tpu.memory_space<any>>
    %c0_i32_70 = arith.constant 0 : i32
    %c0_i32_71 = arith.constant 0 : i32
    %166 = tpu.memref_slice %arg5[%c0_i32_67, %c0_i32_70, %c0_i32_71] : memref<2x96x96xi8, #tpu.memory_space<vmem>> -> memref<1x96x96xi8, #tpu.memory_space<vmem>>
    %167 = tpu.memref_squeeze %166 : memref<1x96x96xi8, #tpu.memory_space<vmem>> -> memref<96x96xi8, #tpu.memory_space<vmem>>
    %168 = tpu.memref_slice %arg6[%c0_i32_68] : memref<2x!tpu.dma_semaphore, #tpu.memory_space<semaphore_mem>> -> memref<1x!tpu.dma_semaphore, #tpu.memory_space<semaphore_mem>>
    %169 = tpu.memref_squeeze %168 : memref<1x!tpu.dma_semaphore, #tpu.memory_space<semaphore_mem>> -> memref<!tpu.dma_semaphore, #tpu.memory_space<semaphore_mem>>
    tpu.enqueue_dma source(%165 : memref<96x96xi8, #tpu.memory_space<any>>) target(%167 : memref<96x96xi8, #tpu.memory_space<vmem>>) target_semaphore(%169 : memref<!tpu.dma_semaphore, #tpu.memory_space<semaphore_mem>>)
    %c0_i32_72 = arith.constant 0 : i32
    %c1_i32_73 = arith.constant 1 : i32
    %170 = arith.muli %c0_i32_72, %c1_i32_73 : i32
    %c0_i32_74 = arith.constant 0 : i32
    %171 = arith.addi %c0_i32_74, %170 : i32
    %c1_i32_75 = arith.constant 1 : i32
    %172 = arith.andi %171, %c1_i32_75 : i32
    %c0_i32_76 = arith.constant 0 : i32
    %c0_i32_77 = arith.constant 0 : i32
    %173 = tpu.memref_slice %arg3[%c0_i32_76, %c0_i32_77] : memref<96x96xi8, #tpu.memory_space<any>> -> memref<96x96xi8, #tpu.memory_space<any>>
    %c0_i32_78 = arith.constant 0 : i32
    %c0_i32_79 = arith.constant 0 : i32
    %174 = tpu.memref_slice %arg5[%172, %c0_i32_78, %c0_i32_79] : memref<2x96x96xi8, #tpu.memory_space<vmem>> -> memref<1x96x96xi8, #tpu.memory_space<vmem>>
    %175 = tpu.memref_squeeze %174 : memref<1x96x96xi8, #tpu.memory_space<vmem>> -> memref<96x96xi8, #tpu.memory_space<vmem>>
    %176 = tpu.memref_slice %arg6[%172] : memref<2x!tpu.dma_semaphore, #tpu.memory_space<semaphore_mem>> -> memref<1x!tpu.dma_semaphore, #tpu.memory_space<semaphore_mem>>
    %177 = tpu.memref_squeeze %176 : memref<1x!tpu.dma_semaphore, #tpu.memory_space<semaphore_mem>> -> memref<!tpu.dma_semaphore, #tpu.memory_space<semaphore_mem>>
    tpu.wait_dma2 semaphore(%177 : memref<!tpu.dma_semaphore, #tpu.memory_space<semaphore_mem>>) src(%173 : memref<96x96xi8, #tpu.memory_space<any>>) dst(%175 : memref<96x96xi8, #tpu.memory_space<vmem>>)
    %c1_i32_80 = arith.constant 1 : i32
    %178 = arith.addi %171, %c1_i32_80 : i32
    %c1_i32_81 = arith.constant 1 : i32
    %179 = arith.cmpi slt, %178, %c1_i32_81 : i32
    %180 = arith.extui %179 : i1 to i32
    %c0_i32_82 = arith.constant 0 : i32
    %181 = arith.cmpi ne, %180, %c0_i32_82 : i32
    scf.if %181 {
      %c1_i32_102 = arith.constant 1 : i32
      %243 = arith.addi %171, %c1_i32_102 : i32
      %c1_i32_103 = arith.constant 1 : i32
      %244 = arith.subi %c1_i32_103, %172 : i32
      %c96_i32_104 = arith.constant 96 : i32
      %245 = arith.muli %243, %c96_i32_104 : i32
      %246 = tpu.assume_multiple %245, 96 : i32
      %c0_i32_105 = arith.constant 0 : i32
      %247 = tpu.memref_slice %arg3[%246, %c0_i32_105] : memref<96x96xi8, #tpu.memory_space<any>> -> memref<96x96xi8, #tpu.memory_space<any>>
      %c0_i32_106 = arith.constant 0 : i32
      %c0_i32_107 = arith.constant 0 : i32
      %248 = tpu.memref_slice %arg5[%244, %c0_i32_106, %c0_i32_107] : memref<2x96x96xi8, #tpu.memory_space<vmem>> -> memref<1x96x96xi8, #tpu.memory_space<vmem>>
      %249 = tpu.memref_squeeze %248 : memref<1x96x96xi8, #tpu.memory_space<vmem>> -> memref<96x96xi8, #tpu.memory_space<vmem>>
      %250 = tpu.memref_slice %arg6[%244] : memref<2x!tpu.dma_semaphore, #tpu.memory_space<semaphore_mem>> -> memref<1x!tpu.dma_semaphore, #tpu.memory_space<semaphore_mem>>
      %251 = tpu.memref_squeeze %250 : memref<1x!tpu.dma_semaphore, #tpu.memory_space<semaphore_mem>> -> memref<!tpu.dma_semaphore, #tpu.memory_space<semaphore_mem>>
      tpu.enqueue_dma source(%247 : memref<96x96xi8, #tpu.memory_space<any>>) target(%249 : memref<96x96xi8, #tpu.memory_space<vmem>>) target_semaphore(%251 : memref<!tpu.dma_semaphore, #tpu.memory_space<semaphore_mem>>)
    } else {
    }
    %182 = arith.index_cast %172 : i32 to index
    %c0_83 = arith.constant 0 : index
    %c0_84 = arith.constant 0 : index
    %183 = vector.load %arg5[%182, %c0_83, %c0_84] : memref<2x96x96xi8, #tpu.memory_space<vmem>>, vector<1x96x96xi8>
    %184 = vector.shape_cast %183 : vector<1x96x96xi8> to vector<96x96xi8>
    %185 = arith.sitofp %184 : vector<96x96xi8> to vector<96x96xf32>
    %186 = arith.truncf %185 : vector<96x96xf32> to vector<96x96xbf16>
    %c96_i32_85 = arith.constant 96 : i32
    %187 = arith.muli %171, %c96_i32_85 : i32
    %188 = tpu.assume_multiple %187, 96 : i32
    %cst_86 = arith.constant dense<0.000000e+00> : vector<96x16xf32>
    %189 = tpu.matmul %186, %163, %cst_86 {dimension_numbers = #tpu.dot_dimension_numbers<[1], [0], [0], [1], [0, 0, 1, 1], [], []>} : vector<96x96xbf16>, vector<96x16xbf16>, vector<96x16xf32> -> vector<96x16xf32>
    %190 = arith.index_cast %188 : i32 to index
    %c0_87 = arith.constant 0 : index
    %191 = vector.load %arg7[%190, %c0_87] : memref<96x16xf32, #tpu.memory_space<vmem>>, vector<96x16xf32>
    tpu.vector_store %arg7[%190, %c0_87], %189 {strides = array<i32>} : memref<96x16xf32, #tpu.memory_space<vmem>>, vector<96x16xf32>,
    %c1_i32_88 = arith.constant 1 : i32
    %c0_89 = arith.constant 0 : index
    %c0_90 = arith.constant 0 : index
    %192 = vector.load %arg7[%c0_89, %c0_90] : memref<96x16xf32, #tpu.memory_space<vmem>>, vector<96x16xf32>
    %193 = vector.broadcast %3 : vector<96x1xf32> to vector<96x16xf32>
    %194 = arith.mulf %193, %192 : vector<96x16xf32>
    %195 = vector.extract_strided_slice %5 {offsets = [2, 0, 0], sizes = [1, 16, 16], strides = [1, 1, 1]} : vector<3x16x16xf32> to vector<1x16x16xf32>
    %196 = vector.shape_cast %195 : vector<1x16x16xf32> to vector<16x16xf32>
    %cst_91 = arith.constant dense<0.000000e+00> : vector<96x16xf32>
    %197 = tpu.matmul %194, %196, %cst_91 {dimension_numbers = #tpu.dot_dimension_numbers<[1], [0], [0], [1], [0, 0, 1, 1], [], []>} : vector<96x16xf32>, vector<16x16xf32>, vector<96x16xf32> -> vector<96x16xf32>
    %198 = vector.extract_strided_slice %6 {offsets = [2, 0, 0], sizes = [1, 1, 16], strides = [1, 1, 1]} : vector<3x3x16xf32> to vector<1x1x16xf32>
    %199 = vector.shape_cast %198 : vector<1x1x16xf32> to vector<1x16xf32>
    %200 = vector.extract_strided_slice %6 {offsets = [2, 1, 0], sizes = [1, 1, 16], strides = [1, 1, 1]} : vector<3x3x16xf32> to vector<1x1x16xf32>
    %201 = vector.shape_cast %200 : vector<1x1x16xf32> to vector<1x16xf32>
    %202 = vector.extract_strided_slice %6 {offsets = [2, 2, 0], sizes = [1, 1, 16], strides = [1, 1, 1]} : vector<3x3x16xf32> to vector<1x1x16xf32>
    %203 = vector.shape_cast %202 : vector<1x1x16xf32> to vector<1x16xf32>
    %204 = vector.broadcast %199 : vector<1x16xf32> to vector<96x16xf32>
    %205 = arith.addf %197, %204 : vector<96x16xf32>
    %206 = vector.broadcast %2 : vector<96x1xf32> to vector<96x16xf32>
    %207 = arith.mulf %205, %206 : vector<96x16xf32>
    %208 = vector.broadcast %11 : vector<96x1xf32> to vector<96x16xf32>
    %209 = arith.mulf %207, %208 : vector<96x16xf32>
    %cst_92 = arith.constant dense<0.000000e+00> : vector<16xf32>
    %210 = vector.multi_reduction <add>, %209, %cst_92 [0] : vector<96x16xf32> to vector<16xf32>
    %211 = vector.shape_cast %210 : vector<16xf32> to vector<1x16xf32>
    %cst_93 = arith.constant 0.0133333337 : f32
    %212 = vector.broadcast %cst_93 : f32 to vector<1x16xf32>
    %213 = arith.mulf %211, %212 : vector<1x16xf32>
    %214 = vector.broadcast %213 : vector<1x16xf32> to vector<96x16xf32>
    %215 = arith.subf %207, %214 : vector<96x16xf32>
    %216 = arith.mulf %215, %215 : vector<96x16xf32>
    %217 = vector.broadcast %11 : vector<96x1xf32> to vector<96x16xf32>
    %218 = arith.mulf %216, %217 : vector<96x16xf32>
    %cst_94 = arith.constant dense<0.000000e+00> : vector<16xf32>
    %219 = vector.multi_reduction <add>, %218, %cst_94 [0] : vector<96x16xf32> to vector<16xf32>
    %220 = vector.shape_cast %219 : vector<16xf32> to vector<1x16xf32>
    %cst_95 = arith.constant 0.0133333337 : f32
    %221 = vector.broadcast %cst_95 : f32 to vector<1x16xf32>
    %222 = arith.mulf %220, %221 : vector<1x16xf32>
    %223 = vector.broadcast %201 : vector<1x16xf32> to vector<96x16xf32>
    %224 = arith.mulf %223, %215 : vector<96x16xf32>
    %cst_96 = arith.constant 9.99999974E-6 : f32
    %225 = vector.broadcast %cst_96 : f32 to vector<1x16xf32>
    %226 = arith.addf %222, %225 : vector<1x16xf32>
    %227 = math.rsqrt %226 : vector<1x16xf32>
    %228 = vector.broadcast %227 : vector<1x16xf32> to vector<96x16xf32>
    %229 = arith.mulf %224, %228 : vector<96x16xf32>
    %230 = vector.broadcast %203 : vector<1x16xf32> to vector<96x16xf32>
    %231 = arith.addf %229, %230 : vector<96x16xf32>
    %232 = vector.extract_strided_slice %231 {offsets = [0, 0], sizes = [96, 1], strides = [1, 1]} : vector<96x16xf32> to vector<96x1xf32>
    %233 = arith.addf %86, %160 : vector<96x16xf32>
    %cst_97 = arith.constant dense<0.000000e+00> : vector<96xf32>
    %234 = vector.multi_reduction <add>, %233, %cst_97 [1] : vector<96x16xf32> to vector<96xf32>
    %235 = vector.shape_cast %234 : vector<96xf32> to vector<96x1xf32>
    %cst_98 = arith.constant 6.250000e-02 : f32
    %236 = vector.broadcast %cst_98 : f32 to vector<96x1xf32>
    %237 = arith.mulf %235, %236 : vector<96x1xf32>
    %238 = arith.addf %1, %237 : vector<96x1xf32>
    %239 = arith.addf %238, %232 : vector<96x1xf32>
    %cst_99 = arith.constant 0.000000e+00 : f32
    %240 = vector.broadcast %cst_99 : f32 to vector<96x1xf32>
    %241 = arith.maximumf %239, %240 : vector<96x1xf32>
    %c0_100 = arith.constant 0 : index
    %c0_101 = arith.constant 0 : index
    %242 = vector.load %arg4[%c0_100, %c0_101] : memref<96x1xf32, #tpu.memory_space<vmem>>, vector<96x1xf32>
    tpu.vector_store %arg4[%c0_100, %c0_101], %241 {strides = array<i32>} : memref<96x1xf32, #tpu.memory_space<vmem>>, vector<96x1xf32>,
    return
  }
}

</mosaic_0001>

<llo_original>
// kernel: tpu_custom_call.1
$region0: #{tpu_custom_call.1}
  #allocation0 [shape = 'u32[]', space=smem, size = 0x4, offset = 0x4, fixed_abs, tag = 'smem constant byte address 0x4 - core index']
  #allocation1 [shape = 'u32[72,128]{1,0:T(1,128)}', space=vmem, size = 0x9000, scoped, tag = 'internal scratch']
  #allocation2 [shape = 's8[2,96,96]{2,1,0:T(32,128)(4,1)}', space=vmem, size = 0x6000, scoped, tag = 'scratch operand']
  #allocation3 [shape = 's32[2]{0}', space=sflag, size = 0x8, scoped, tag = 'scratch operand']
  #allocation4 [shape = 'f32[96,16]{1,0:T(8,128)}', space=vmem, size = 0xc000, scoped, tag = 'scratch operand']
  #allocation5 [shape = 's32[]', space=sflag, size = 0x4, offset = 0, fixed_abs, tag = 'sflag constant byte address 0x0 - dummy sync flag']
  #allocation6 [shape = 's32[]', space=sflag, size = 0x4, offset = 0, fixed_abs, tag = 'sflag constant byte address 0x0 - dummy sync flag']
  #allocation7 [shape = 's32[]', space=sflag, size = 0x4, offset = 0, fixed_abs, tag = 'sflag constant byte address 0x0 - dummy sync flag']
  %s0 = inlined_call_operand.vmem [shape: f32[96,4], index: 0, kind: input, shape index: {}]
  %s1 = inlined_call_operand.vmem [shape: f32[3,16,16], index: 1, kind: input, shape index: {}]
  %s2 = inlined_call_operand.vmem [shape: f32[3,3,16], index: 2, kind: input, shape index: {}]
  %s3 = inlined_call_operand.vmem [shape: s8[96,96], index: 3, kind: input, shape index: {}]
  %s4 = inlined_call_operand.vmem [shape: f32[96,1], index: 4, kind: output, shape index: {}]
  %s5 = sld [smem:[#allocation0]]
  $region79: #{tpu_custom_call.1} parent=0
    _
  %s7 = ssub.s32 1, %s5
  %s8 = scalar_select 0, %s7, %s5
  // Predicated region
  $region2: #{tpu_custom_call.1} parent=0 // pred_check
    _
  $region3: #{tpu_custom_call.1} parent=0 // pred_check_branch
    %10 = sbr.rel (0) target = $region5
  $region4: #{tpu_custom_call.1} parent=0 // pred_region
    _
  $region5: #{tpu_custom_call.1} parent=0 // pred_fallthru
    _
  // Predicated region
  $region6: #{tpu_custom_call.1} parent=0 // pred_check
    _
  $region7: #{tpu_custom_call.1} parent=0 // pred_check_branch
    %12 = sbr.rel (0) target = $region9
  $region8: #{tpu_custom_call.1} parent=0 // pred_region
    _
  $region9: #{tpu_custom_call.1} parent=0 // pred_fallthru
    _
  // Predicated region
  $region10: #{tpu_custom_call.1} parent=0 // pred_check
    _
  $region11: #{tpu_custom_call.1} parent=0 // pred_check_branch
    %14 = sbr.rel (0) target = $region13
  $region12: #{tpu_custom_call.1} parent=0 // pred_region
    _
  $region13: #{tpu_custom_call.1} parent=0 // pred_fallthru
    _
  %v16 = vld [vmem:[%s0] sm:$0xff]
  %v17 = vld [vmem:[%s0 + $0x8] sm:$0xff]
  %v18 = vld [vmem:[%s0 + $0x10] sm:$0xff]
  %v19 = vld [vmem:[%s0 + $0x18] sm:$0xff]
  %v20 = vld [vmem:[%s0 + $0x20] sm:$0xff]
  %v21 = vld [vmem:[%s0 + $0x28] sm:$0xff]
  %v22 = vld [vmem:[%s0 + $0x30] sm:$0xff]
  %v23 = vld [vmem:[%s0 + $0x38] sm:$0xff]
  %v24 = vld [vmem:[%s0 + $0x40] sm:$0xff]
  %v25 = vld [vmem:[%s0 + $0x48] sm:$0xff]
  %v26 = vld [vmem:[%s0 + $0x50] sm:$0xff]
  %v27 = vld [vmem:[%s0 + $0x58] sm:$0xff]
  %v28 = vld [vmem:[%s1] sm:$0xff]
  %v29 = vld [vmem:[%s1 + $0x10] sm:$0xff]
  %v30 = vld [vmem:[%s1 + $0x18] sm:$0xff]
  %v31 = vld [vmem:[%s1 + $0x20] sm:$0xff]
  %v32 = vld [vmem:[%s1 + $0x28] sm:$0xff]
  %v33 = vld [vmem:[%s2] sm:$0x7]
  %v34 = vld [vmem:[%s2 + $0x4] sm:$0x7]
  %v35 = vld [vmem:[%s2 + $0x8] sm:$0x7]
  %v36 = vlaneseq
  %v37 = vshrl.u32 %v36, 7
  %v38 = vadd.s32 %v37, 8
  %v39 = vadd.s32 %v37, 16
  %v40 = vadd.s32 %v37, 24
  %v41 = vadd.s32 %v37, 32
  %v42 = vadd.s32 %v37, 40
  %v43 = vadd.s32 %v37, 48
  %v44 = vadd.s32 %v37, 56
  %v45 = vadd.s32 %v37, 64
  %v46 = vadd.s32 %v37, 72
  %v47 = vadd.s32 %v37, 80
  %v48 = vadd.s32 %v37, 88
  %vm49 = vcmp.lt.s32.totalorder %v37, 75
  %vm50 = vcmp.lt.s32.totalorder %v38, 75
  %vm51 = vcmp.lt.s32.totalorder %v39, 75
  %vm52 = vcmp.lt.s32.totalorder %v40, 75
  %vm53 = vcmp.lt.s32.totalorder %v41, 75
  %vm54 = vcmp.lt.s32.totalorder %v42, 75
  %vm55 = vcmp.lt.s32.totalorder %v43, 75
  %vm56 = vcmp.lt.s32.totalorder %v44, 75
  %vm57 = vcmp.lt.s32.totalorder %v45, 75
  %vm58 = vcmp.lt.s32.totalorder %v46, 75
  %vm59 = vcmp.lt.s32.totalorder %v47, 75
  %vm60 = vcmp.lt.s32.totalorder %v48, 75
  %v61 = vsel %vm49, 1, 0
  %v62 = vsel %vm50, 1, 0
  %v63 = vsel %vm51, 1, 0
  %v64 = vsel %vm52, 1, 0
  %v65 = vsel %vm53, 1, 0
  %v66 = vsel %vm54, 1, 0
  %v67 = vsel %vm55, 1, 0
  %v68 = vsel %vm56, 1, 0
  %v69 = vsel %vm57, 1, 0
  %v70 = vsel %vm58, 1, 0
  %v71 = vsel %vm59, 1, 0
  %v72 = vsel %vm60, 1, 0
  %v73 = vcvt.s32.f32 %v61
  %v74 = vcvt.s32.f32 %v62
  %v75 = vcvt.s32.f32 %v63
  %v76 = vcvt.s32.f32 %v64
  %v77 = vcvt.s32.f32 %v65
  %v78 = vcvt.s32.f32 %v66
  %v79 = vcvt.s32.f32 %v67
  %v80 = vcvt.s32.f32 %v68
  %v81 = vcvt.s32.f32 %v69
  %v82 = vcvt.s32.f32 %v70
  %v83 = vcvt.s32.f32 %v71
  %v84 = vcvt.s32.f32 %v72
  %86 = vset.pattern.permute.xlu0 0
  %87 = vperm.xlu0 %86, %v16
  %v88 = vpop.permute.xlu0 %87
  %91 = vset.pattern.permute.xlu0 0
  %92 = vperm.xlu0 %91, %v17
  %v93 = vpop.permute.xlu0 %92
  %96 = vset.pattern.permute.xlu0 0
  %97 = vperm.xlu0 %96, %v18
  %v98 = vpop.permute.xlu0 %97
  %101 = vset.pattern.permute.xlu0 0
  %102 = vperm.xlu0 %101, %v19
  %v103 = vpop.permute.xlu0 %102
  %106 = vset.pattern.permute.xlu0 0
  %107 = vperm.xlu0 %106, %v20
  %v108 = vpop.permute.xlu0 %107
  %111 = vset.pattern.permute.xlu0 0
  %112 = vperm.xlu0 %111, %v21
  %v113 = vpop.permute.xlu0 %112
  %116 = vset.pattern.permute.xlu0 0
  %117 = vperm.xlu0 %116, %v22
  %v118 = vpop.permute.xlu0 %117
  %121 = vset.pattern.permute.xlu0 0
  %122 = vperm.xlu0 %121, %v23
  %v123 = vpop.permute.xlu0 %122
  %126 = vset.pattern.permute.xlu0 0
  %127 = vperm.xlu0 %126, %v24
  %v128 = vpop.permute.xlu0 %127
  %131 = vset.pattern.permute.xlu0 0
  %132 = vperm.xlu0 %131, %v25
  %v133 = vpop.permute.xlu0 %132
  %136 = vset.pattern.permute.xlu0 0
  %137 = vperm.xlu0 %136, %v26
  %v138 = vpop.permute.xlu0 %137
  %141 = vset.pattern.permute.xlu0 0
  %142 = vperm.xlu0 %141, %v27
  %v143 = vpop.permute.xlu0 %142
  %v145 = vperm.slane %v28, 0
  %v146 = vmul.f32 %v88, %v145
  %v147 = vmul.f32 %v93, %v145
  %v148 = vmul.f32 %v98, %v145
  %v149 = vmul.f32 %v103, %v145
  %v150 = vmul.f32 %v108, %v145
  %v151 = vmul.f32 %v113, %v145
  %v152 = vmul.f32 %v118, %v145
  %v153 = vmul.f32 %v123, %v145
  %v154 = vmul.f32 %v128, %v145
  %v155 = vmul.f32 %v133, %v145
  %v156 = vmul.f32 %v138, %v145
  %v157 = vmul.f32 %v143, %v145
  %158 = vset.pattern.permute.xlu0 3
  %159 = vperm.xlu0 %158, %v16
  %v160 = vpop.permute.xlu0 %159
  %162 = vset.pattern.permute.xlu0 3
  %163 = vperm.xlu0 %162, %v17
  %v164 = vpop.permute.xlu0 %163
  %166 = vset.pattern.permute.xlu0 3
  %167 = vperm.xlu0 %166, %v18
  %v168 = vpop.permute.xlu0 %167
  %170 = vset.pattern.permute.xlu0 3
  %171 = vperm.xlu0 %170, %v19
  %v172 = vpop.permute.xlu0 %171
  %174 = vset.pattern.permute.xlu0 3
  %175 = vperm.xlu0 %174, %v20
  %v176 = vpop.permute.xlu0 %175
  %178 = vset.pattern.permute.xlu0 3
  %179 = vperm.xlu0 %178, %v21
  %v180 = vpop.permute.xlu0 %179
  %182 = vset.pattern.permute.xlu0 3
  %183 = vperm.xlu0 %182, %v22
  %v184 = vpop.permute.xlu0 %183
  %186 = vset.pattern.permute.xlu0 3
  %187 = vperm.xlu0 %186, %v23
  %v188 = vpop.permute.xlu0 %187
  %190 = vset.pattern.permute.xlu0 3
  %191 = vperm.xlu0 %190, %v24
  %v192 = vpop.permute.xlu0 %191
  %194 = vset.pattern.permute.xlu0 3
  %195 = vperm.xlu0 %194, %v25
  %v196 = vpop.permute.xlu0 %195
  %198 = vset.pattern.permute.xlu0 3
  %199 = vperm.xlu0 %198, %v26
  %v200 = vpop.permute.xlu0 %199
  %202 = vset.pattern.permute.xlu0 3
  %203 = vperm.xlu0 %202, %v27
  %v204 = vpop.permute.xlu0 %203
  %v206 = vmul.f32 %v146, %v160
  %v207 = vmul.f32 %v147, %v164
  %v208 = vmul.f32 %v148, %v168
  %v209 = vmul.f32 %v149, %v172
  %v210 = vmul.f32 %v150, %v176
  %v211 = vmul.f32 %v151, %v180
  %v212 = vmul.f32 %v152, %v184
  %v213 = vmul.f32 %v153, %v188
  %v214 = vmul.f32 %v154, %v192
  %v215 = vmul.f32 %v155, %v196
  %v216 = vmul.f32 %v156, %v200
  %v217 = vmul.f32 %v157, %v204
  %v218 = vpack.c.bf16 %v207, %v206
  %v219 = vpack.c.bf16 %v209, %v208
  %v220 = vpack.c.bf16 %v211, %v210
  %v221 = vpack.c.bf16 %v213, %v212
  %v222 = vpack.c.bf16 %v215, %v214
  %v223 = vpack.c.bf16 %v217, %v216
  // Predicated region
  $region14: #{tpu_custom_call.1} parent=0 // pred_check
    _
  $region15: #{tpu_custom_call.1} parent=0 // pred_check_branch
    %225 = sbr.rel (0) target = $region17
  $region16: #{tpu_custom_call.1} parent=0 // pred_region
    loop: start=0, step=1, limit=1
    $region18: #{tpu_custom_call.1} parent=16 // loop_pre_header
      _
    $region19: #{tpu_custom_call.1} parent=16 // loop_header
      %s227 = sphi 0, %s231
      %p228 = scmp.ge.s32.totalorder %s227, 1
      %s232 = sphi %s3, %s3
      %s233 = sphi [#allocation2], [#allocation2]
    $region20: #{tpu_custom_call.1} parent=16 // loop_header_branch
      %230 = sbr.rel (%p228) target = $region24
    $region21: #{tpu_custom_call.1} parent=16 // loop_body
      %v234 = vld [vmem:[%s232] sm:$0xff]
      %235 = vst [vmem:[%s233] sm:$0xff] %v234
      %v236 = vld [vmem:[%s232 + $0x8] sm:$0xff]
      %237 = vst [vmem:[%s233 + $0x8] sm:$0xff] %v236
      %v238 = vld [vmem:[%s232 + $0x10] sm:$0xff]
      %239 = vst [vmem:[%s233 + $0x10] sm:$0xff] %v238
    $region22: #{tpu_custom_call.1} parent=16 // loop_footer
      %s231 = sadd.s32 1, %s227
    $region23: #{tpu_custom_call.1} parent=16 // loop_footer_branch
      %226 = sbr.rel target = $region19
    $region24: #{tpu_custom_call.1} parent=16 // loop_exit
      _
  $region17: #{tpu_custom_call.1} parent=0 // pred_fallthru
    _
  // Predicated region
  $region25: #{tpu_custom_call.1} parent=0 // pred_check
    _
  $region26: #{tpu_custom_call.1} parent=0 // pred_check_branch
    %241 = sbr.rel target = $region28
  $region27: #{tpu_custom_call.1} parent=0 // pred_region
    _
  $region28: #{tpu_custom_call.1} parent=0 // pred_fallthru
    _
  // Predicated region
  $region29: #{tpu_custom_call.1} parent=0 // pred_check
    _
  $region30: #{tpu_custom_call.1} parent=0 // pred_check_branch
    %244 = sbr.rel (0) target = $region32
  $region31: #{tpu_custom_call.1} parent=0 // pred_region
    %245 = vsyncadd [#allocation3], 384
  $region32: #{tpu_custom_call.1} parent=0 // pred_fallthru
    _
  %s246 = smul.u32 2, 12
  %s247 = smul.u32 %s246, 1
  %s248 = sshll.u32 %s247, 4
  %249 = dma.done [#allocation3], %s248
  %v250 = vld [vmem:[#allocation2] sm:$0xff]
  %v251 = vld [vmem:[#allocation2 + $0x8] sm:$0xff]
  %v252 = vld [vmem:[#allocation2 + $0x10] sm:$0xff]
  %v253 = vunpack.c.0.s8 %v250
  %v254 = vunpack.c.1.s8 %v250
  %v255 = vunpack.c.2.s8 %v250
  %v256 = vunpack.c.3.s8 %v250
  %v257 = vunpack.c.0.s8 %v251
  %v258 = vunpack.c.1.s8 %v251
  %v259 = vunpack.c.2.s8 %v251
  %v260 = vunpack.c.3.s8 %v251
  %v261 = vunpack.c.0.s8 %v252
  %v262 = vunpack.c.1.s8 %v252
  %v263 = vunpack.c.2.s8 %v252
  %v264 = vunpack.c.3.s8 %v252
  %v265 = vcvt.s32.f32 %v253
  %v266 = vcvt.s32.f32 %v254
  %v267 = vcvt.s32.f32 %v255
  %v268 = vcvt.s32.f32 %v256
  %v269 = vcvt.s32.f32 %v257
  %v270 = vcvt.s32.f32 %v258
  %v271 = vcvt.s32.f32 %v259
  %v272 = vcvt.s32.f32 %v260
  %v273 = vcvt.s32.f32 %v261
  %v274 = vcvt.s32.f32 %v262
  %v275 = vcvt.s32.f32 %v263
  %v276 = vcvt.s32.f32 %v264
  %v277 = vpack.c.bf16 %v266, %v265
  %v278 = vpack.c.bf16 %v268, %v267
  %v279 = vpack.c.bf16 %v270, %v269
  %v280 = vpack.c.bf16 %v272, %v271
  %v281 = vpack.c.bf16 %v274, %v273
  %v282 = vpack.c.bf16 %v276, %v275
  %vm283 = vcmask 785408
  %v285 = vsel %vm283, %v277, 0
  %v288 = vsel %vm283, %v278, 0
  %v291 = vsel %vm283, %v279, 0
  %v294 = vsel %vm283, %v280, 0
  %v297 = vsel %vm283, %v281, 0
  %v300 = vsel %vm283, %v282, 0
  %302 = vmatpush.bf16.msra.mxu0 0
  %303 = vmatpush.bf16.msra.mxu0 0
  %304 = vmatpush.bf16.msra.mxu0 %v223
  %305 = vmatpush.bf16.msra.mxu0 %v222
  %306 = vmatpush.bf16.msra.mxu0 %v221
  %307 = vmatpush.bf16.msra.mxu0 %v220
  %308 = vmatpush.bf16.msra.mxu0 %v219
  %309 = vmatpush.bf16.msra.mxu0 %v218
  %310 = vmatmul.bf16.gmra.mxu0 %v285
  %v311 = vpop.f32.mrf.mxu0
  %v312 = vadd.f32 0.0, %v311
  %v313 = vpop.f32.mrf.mxu0
  %v314 = vadd.f32 0.0, %v313
  %315 = vmatmul.bf16.gmra.mxu0 %v288
  %v316 = vpop.f32.mrf.mxu0
  %v317 = vadd.f32 0.0, %v316
  %v318 = vpop.f32.mrf.mxu0
  %v319 = vadd.f32 0.0, %v318
  %320 = vmatmul.bf16.gmra.mxu0 %v291
  %v321 = vpop.f32.mrf.mxu0
  %v322 = vadd.f32 0.0, %v321
  %v323 = vpop.f32.mrf.mxu0
  %v324 = vadd.f32 0.0, %v323
  %325 = vmatmul.bf16.gmra.mxu0 %v294
  %v326 = vpop.f32.mrf.mxu0
  %v327 = vadd.f32 0.0, %v326
  %v328 = vpop.f32.mrf.mxu0
  %v329 = vadd.f32 0.0, %v328
  %330 = vmatmul.bf16.gmra.mxu0 %v297
  %v331 = vpop.f32.mrf.mxu0
  %v332 = vadd.f32 0.0, %v331
  %v333 = vpop.f32.mrf.mxu0
  %v334 = vadd.f32 0.0, %v333
  %335 = vmatmul.bf16.gmra.mxu0 %v300
  %v336 = vpop.f32.mrf.mxu0
  %v337 = vadd.f32 0.0, %v336
  %v338 = vpop.f32.mrf.mxu0
  %v339 = vadd.f32 0.0, %v338
  %340 = vdwg.mxu0
  %vm341 = vcmask 130048
  %342 = vst.msk [vmem:[#allocation4] sm:$0xff] %vm341, %v312
  %343 = vst.msk [vmem:[#allocation4 + $0x8] sm:$0xff] %vm341, %v314
  %344 = vst.msk [vmem:[#allocation4 + $0x10] sm:$0xff] %vm341, %v317
  %345 = vst.msk [vmem:[#allocation4 + $0x18] sm:$0xff] %vm341, %v319
  %346 = vst.msk [vmem:[#allocation4 + $0x20] sm:$0xff] %vm341, %v322
  %347 = vst.msk [vmem:[#allocation4 + $0x28] sm:$0xff] %vm341, %v324
  %348 = vst.msk [vmem:[#allocation4 + $0x30] sm:$0xff] %vm341, %v327
  %349 = vst.msk [vmem:[#allocation4 + $0x38] sm:$0xff] %vm341, %v329
  %350 = vst.msk [vmem:[#allocation4 + $0x40] sm:$0xff] %vm341, %v332
  %351 = vst.msk [vmem:[#allocation4 + $0x48] sm:$0xff] %vm341, %v334
  %352 = vst.msk [vmem:[#allocation4 + $0x50] sm:$0xff] %vm341, %v337
  %353 = vst.msk [vmem:[#allocation4 + $0x58] sm:$0xff] %vm341, %v339
  %v354 = vld [vmem:[#allocation4] sm:$0xff]
  %v355 = vld [vmem:[#allocation4 + $0x8] sm:$0xff]
  %v356 = vld [vmem:[#allocation4 + $0x10] sm:$0xff]
  %v357 = vld [vmem:[#allocation4 + $0x18] sm:$0xff]
  %v358 = vld [vmem:[#allocation4 + $0x20] sm:$0xff]
  %v359 = vld [vmem:[#allocation4 + $0x28] sm:$0xff]
  %v360 = vld [vmem:[#allocation4 + $0x30] sm:$0xff]
  %v361 = vld [vmem:[#allocation4 + $0x38] sm:$0xff]
  %v362 = vld [vmem:[#allocation4 + $0x40] sm:$0xff]
  %v363 = vld [vmem:[#allocation4 + $0x48] sm:$0xff]
  %v364 = vld [vmem:[#allocation4 + $0x50] sm:$0xff]
  %v365 = vld [vmem:[#allocation4 + $0x58] sm:$0xff]
  %366 = vset.pattern.permute.xlu0 2
  %367 = vperm.xlu0 %366, %v16
  %v368 = vpop.permute.xlu0 %367
  %370 = vset.pattern.permute.xlu0 2
  %371 = vperm.xlu0 %370, %v17
  %v372 = vpop.permute.xlu0 %371
  %374 = vset.pattern.permute.xlu0 2
  %375 = vperm.xlu0 %374, %v18
  %v376 = vpop.permute.xlu0 %375
  %378 = vset.pattern.permute.xlu0 2
  %379 = vperm.xlu0 %378, %v19
  %v380 = vpop.permute.xlu0 %379
  %382 = vset.pattern.permute.xlu0 2
  %383 = vperm.xlu0 %382, %v20
  %v384 = vpop.permute.xlu0 %383
  %386 = vset.pattern.permute.xlu0 2
  %387 = vperm.xlu0 %386, %v21
  %v388 = vpop.permute.xlu0 %387
  %390 = vset.pattern.permute.xlu0 2
  %391 = vperm.xlu0 %390, %v22
  %v392 = vpop.permute.xlu0 %391
  %394 = vset.pattern.permute.xlu0 2
  %395 = vperm.xlu0 %394, %v23
  %v396 = vpop.permute.xlu0 %395
  %398 = vset.pattern.permute.xlu0 2
  %399 = vperm.xlu0 %398, %v24
  %v400 = vpop.permute.xlu0 %399
  %402 = vset.pattern.permute.xlu0 2
  %403 = vperm.xlu0 %402, %v25
  %v404 = vpop.permute.xlu0 %403
  %406 = vset.pattern.permute.xlu0 2
  %407 = vperm.xlu0 %406, %v26
  %v408 = vpop.permute.xlu0 %407
  %410 = vset.pattern.permute.xlu0 2
  %411 = vperm.xlu0 %410, %v27
  %v412 = vpop.permute.xlu0 %411
  %v414 = vmul.f32 %v368, %v354
  %v415 = vmul.f32 %v372, %v355
  %v416 = vmul.f32 %v376, %v356
  %v417 = vmul.f32 %v380, %v357
  %v418 = vmul.f32 %v384, %v358
  %v419 = vmul.f32 %v388, %v359
  %v420 = vmul.f32 %v392, %v360
  %v421 = vmul.f32 %v396, %v361
  %v422 = vmul.f32 %v400, %v362
  %v423 = vmul.f32 %v404, %v363
  %v424 = vmul.f32 %v408, %v364
  %v425 = vmul.f32 %v412, %v365
  %v426 = vperm.slane %v33, 0
  %v427 = vadd.f32 %v414, %v426
  %v428 = vadd.f32 %v415, %v426
  %v429 = vadd.f32 %v416, %v426
  %v430 = vadd.f32 %v417, %v426
  %v431 = vadd.f32 %v418, %v426
  %v432 = vadd.f32 %v419, %v426
  %v433 = vadd.f32 %v420, %v426
  %v434 = vadd.f32 %v421, %v426
  %v435 = vadd.f32 %v422, %v426
  %v436 = vadd.f32 %v423, %v426
  %v437 = vadd.f32 %v424, %v426
  %v438 = vadd.f32 %v425, %v426
  %439 = vset.pattern.permute.xlu0 1
  %440 = vperm.xlu0 %439, %v16
  %v441 = vpop.permute.xlu0 %440
  %443 = vset.pattern.permute.xlu0 1
  %444 = vperm.xlu0 %443, %v17
  %v445 = vpop.permute.xlu0 %444
  %447 = vset.pattern.permute.xlu0 1
  %448 = vperm.xlu0 %447, %v18
  %v449 = vpop.permute.xlu0 %448
  %451 = vset.pattern.permute.xlu0 1
  %452 = vperm.xlu0 %451, %v19
  %v453 = vpop.permute.xlu0 %452
  %455 = vset.pattern.permute.xlu0 1
  %456 = vperm.xlu0 %455, %v20
  %v457 = vpop.permute.xlu0 %456
  %459 = vset.pattern.permute.xlu0 1
  %460 = vperm.xlu0 %459, %v21
  %v461 = vpop.permute.xlu0 %460
  %463 = vset.pattern.permute.xlu0 1
  %464 = vperm.xlu0 %463, %v22
  %v465 = vpop.permute.xlu0 %464
  %467 = vset.pattern.permute.xlu0 1
  %468 = vperm.xlu0 %467, %v23
  %v469 = vpop.permute.xlu0 %468
  %471 = vset.pattern.permute.xlu0 1
  %472 = vperm.xlu0 %471, %v24
  %v473 = vpop.permute.xlu0 %472
  %475 = vset.pattern.permute.xlu0 1
  %476 = vperm.xlu0 %475, %v25
  %v477 = vpop.permute.xlu0 %476
  %479 = vset.pattern.permute.xlu0 1
  %480 = vperm.xlu0 %479, %v26
  %v481 = vpop.permute.xlu0 %480
  %483 = vset.pattern.permute.xlu0 1
  %484 = vperm.xlu0 %483, %v27
  %v485 = vpop.permute.xlu0 %484
  %v487 = vmul.f32 %v427, %v441
  %v488 = vmul.f32 %v428, %v445
  %v489 = vmul.f32 %v429, %v449
  %v490 = vmul.f32 %v430, %v453
  %v491 = vmul.f32 %v431, %v457
  %v492 = vmul.f32 %v432, %v461
  %v493 = vmul.f32 %v433, %v465
  %v494 = vmul.f32 %v434, %v469
  %v495 = vmul.f32 %v435, %v473
  %v496 = vmul.f32 %v436, %v477
  %v497 = vmul.f32 %v437, %v481
  %v498 = vmul.f32 %v438, %v485
  %v499 = vmul.f32 %v487, %v73
  %v500 = vmul.f32 %v488, %v74
  %v501 = vmul.f32 %v489, %v75
  %v502 = vmul.f32 %v490, %v76
  %v503 = vmul.f32 %v491, %v77
  %v504 = vmul.f32 %v492, %v78
  %v505 = vmul.f32 %v493, %v79
  %v506 = vmul.f32 %v494, %v80
  %v507 = vmul.f32 %v495, %v81
  %v508 = vmul.f32 %v496, %v82
  %v509 = vmul.f32 %v497, %v83
  %v510 = vmul.f32 %v498, %v84
  %v511 = vsel %vm341, %v499, 0.0
  %v512 = vsel %vm341, %v500, 0.0
  %v513 = vadd.f32 %v511, %v512
  %v514 = vsel %vm341, %v501, 0.0
  %v515 = vadd.f32 %v513, %v514
  %v516 = vsel %vm341, %v502, 0.0
  %v517 = vadd.f32 %v515, %v516
  %v518 = vsel %vm341, %v503, 0.0
  %v519 = vadd.f32 %v517, %v518
  %v520 = vsel %vm341, %v504, 0.0
  %v521 = vadd.f32 %v519, %v520
  %v522 = vsel %vm341, %v505, 0.0
  %v523 = vadd.f32 %v521, %v522
  %v524 = vsel %vm341, %v506, 0.0
  %v525 = vadd.f32 %v523, %v524
  %v526 = vsel %vm341, %v507, 0.0
  %v527 = vadd.f32 %v525, %v526
  %v528 = vsel %vm341, %v508, 0.0
  %v529 = vadd.f32 %v527, %v528
  %v530 = vsel %vm341, %v509, 0.0
  %v531 = vadd.f32 %v529, %v530
  %v532 = vsel %vm341, %v510, 0.0
  %v533 = vadd.f32 %v531, %v532
  %v534 = vrot.slane %v533, 4
  %v535 = vadd.f32 %v533, %v534
  %v536 = vrot.slane %v535, 2
  %v537 = vadd.f32 %v535, %v536
  %v538 = vrot.slane %v537, 1
  %v539 = vadd.f32 %v537, %v538
  %v540 = vmul.f32 %v539, 0.013333334
  %v541 = vsub.f32 %v487, %v540
  %v542 = vsub.f32 %v488, %v540
  %v543 = vsub.f32 %v489, %v540
  %v544 = vsub.f32 %v490, %v540
  %v545 = vsub.f32 %v491, %v540
  %v546 = vsub.f32 %v492, %v540
  %v547 = vsub.f32 %v493, %v540
  %v548 = vsub.f32 %v494, %v540
  %v549 = vsub.f32 %v495, %v540
  %v550 = vsub.f32 %v496, %v540
  %v551 = vsub.f32 %v497, %v540
  %v552 = vsub.f32 %v498, %v540
  %v553 = vmul.f32 %v541, %v541
  %v554 = vmul.f32 %v542, %v542
  %v555 = vmul.f32 %v543, %v543
  %v556 = vmul.f32 %v544, %v544
  %v557 = vmul.f32 %v545, %v545
  %v558 = vmul.f32 %v546, %v546
  %v559 = vmul.f32 %v547, %v547
  %v560 = vmul.f32 %v548, %v548
  %v561 = vmul.f32 %v549, %v549
  %v562 = vmul.f32 %v550, %v550
  %v563 = vmul.f32 %v551, %v551
  %v564 = vmul.f32 %v552, %v552
  %v565 = vmul.f32 %v553, %v73
  %v566 = vmul.f32 %v554, %v74
  %v567 = vmul.f32 %v555, %v75
  %v568 = vmul.f32 %v556, %v76
  %v569 = vmul.f32 %v557, %v77
  %v570 = vmul.f32 %v558, %v78
  %v571 = vmul.f32 %v559, %v79
  %v572 = vmul.f32 %v560, %v80
  %v573 = vmul.f32 %v561, %v81
  %v574 = vmul.f32 %v562, %v82
  %v575 = vmul.f32 %v563, %v83
  %v576 = vmul.f32 %v564, %v84
  %v577 = vsel %vm341, %v565, 0.0
  %v578 = vsel %vm341, %v566, 0.0
  %v579 = vadd.f32 %v577, %v578
  %v580 = vsel %vm341, %v567, 0.0
  %v581 = vadd.f32 %v579, %v580
  %v582 = vsel %vm341, %v568, 0.0
  %v583 = vadd.f32 %v581, %v582
  %v584 = vsel %vm341, %v569, 0.0
  %v585 = vadd.f32 %v583, %v584
  %v586 = vsel %vm341, %v570, 0.0
  %v587 = vadd.f32 %v585, %v586
  %v588 = vsel %vm341, %v571, 0.0
  %v589 = vadd.f32 %v587, %v588
  %v590 = vsel %vm341, %v572, 0.0
  %v591 = vadd.f32 %v589, %v590
  %v592 = vsel %vm341, %v573, 0.0
  %v593 = vadd.f32 %v591, %v592
  %v594 = vsel %vm341, %v574, 0.0
  %v595 = vadd.f32 %v593, %v594
  %v596 = vsel %vm341, %v575, 0.0
  %v597 = vadd.f32 %v595, %v596
  %v598 = vsel %vm341, %v576, 0.0
  %v599 = vadd.f32 %v597, %v598
  %v600 = vrot.slane %v599, 4
  %v601 = vadd.f32 %v599, %v600
  %v602 = vrot.slane %v601, 2
  %v603 = vadd.f32 %v601, %v602
  %v604 = vrot.slane %v603, 1
  %v605 = vadd.f32 %v603, %v604
  %v606 = vmul.f32 %v605, 0.013333334
  %v607 = vperm.slane %v33, 1
  %v608 = vmul.f32 %v607, %v541
  %v609 = vmul.f32 %v607, %v542
  %v610 = vmul.f32 %v607, %v543
  %v611 = vmul.f32 %v607, %v544
  %v612 = vmul.f32 %v607, %v545
  %v613 = vmul.f32 %v607, %v546
  %v614 = vmul.f32 %v607, %v547
  %v615 = vmul.f32 %v607, %v548
  %v616 = vmul.f32 %v607, %v549
  %v617 = vmul.f32 %v607, %v550
  %v618 = vmul.f32 %v607, %v551
  %v619 = vmul.f32 %v607, %v552
  %v620 = vadd.f32 %v606, 1e-05
  %v621 = vrsqrt.pop %v620
  %v622 = vmul.f32 %v621, %v620
  %v623 = vmul.f32 %v622, %v621
  %v624 = vmul.f32 0.5, %v623
  %v625 = vsub.f32 1.5, %v624
  %v626 = vmul.f32 %v621, %v625
  %vm627 = vweird.f32 %v620
  %vm628 = vweird.f32 %v621
  %vm629 = vmor %vm627, %vm628
  %v630 = vsel %vm629, %v621, %v626
  %v631 = vmul.f32 %v608, %v630
  %v632 = vmul.f32 %v609, %v630
  %v633 = vmul.f32 %v610, %v630
  %v634 = vmul.f32 %v611, %v630
  %v635 = vmul.f32 %v612, %v630
  %v636 = vmul.f32 %v613, %v630
  %v637 = vmul.f32 %v614, %v630
  %v638 = vmul.f32 %v615, %v630
  %v639 = vmul.f32 %v616, %v630
  %v640 = vmul.f32 %v617, %v630
  %v641 = vmul.f32 %v618, %v630
  %v642 = vmul.f32 %v619, %v630
  %v643 = vperm.slane %v33, 2
  %v644 = vadd.f32 %v631, %v643
  %v645 = vadd.f32 %v632, %v643
  %v646 = vadd.f32 %v633, %v643
  %v647 = vadd.f32 %v634, %v643
  %v648 = vadd.f32 %v635, %v643
  %v649 = vadd.f32 %v636, %v643
  %v650 = vadd.f32 %v637, %v643
  %v651 = vadd.f32 %v638, %v643
  %v652 = vadd.f32 %v639, %v643
  %v653 = vadd.f32 %v640, %v643
  %v654 = vadd.f32 %v641, %v643
  %v655 = vadd.f32 %v642, %v643
  %v656 = vmax.f32 %v644, 0.0
  %v657 = vmax.f32 %v645, 0.0
  %v658 = vmax.f32 %v646, 0.0
  %v659 = vmax.f32 %v647, 0.0
  %v660 = vmax.f32 %v648, 0.0
  %v661 = vmax.f32 %v649, 0.0
  %v662 = vmax.f32 %v650, 0.0
  %v663 = vmax.f32 %v651, 0.0
  %v664 = vmax.f32 %v652, 0.0
  %v665 = vmax.f32 %v653, 0.0
  %v666 = vmax.f32 %v654, 0.0
  %v667 = vmax.f32 %v655, 0.0
  %v668 = vmul.f32 %v656, %v160
  %v669 = vmul.f32 %v657, %v164
  %v670 = vmul.f32 %v658, %v168
  %v671 = vmul.f32 %v659, %v172
  %v672 = vmul.f32 %v660, %v176
  %v673 = vmul.f32 %v661, %v180
  %v674 = vmul.f32 %v662, %v184
  %v675 = vmul.f32 %v663, %v188
  %v676 = vmul.f32 %v664, %v192
  %v677 = vmul.f32 %v665, %v196
  %v678 = vmul.f32 %v666, %v200
  %v679 = vmul.f32 %v667, %v204
  %v680 = vpack.c.bf16 %v669, %v668
  %v681 = vpack.c.bf16 %v671, %v670
  %v682 = vpack.c.bf16 %v673, %v672
  %v683 = vpack.c.bf16 %v675, %v674
  %v684 = vpack.c.bf16 %v677, %v676
  %v685 = vpack.c.bf16 %v679, %v678
  // Predicated region
  $region33: #{tpu_custom_call.1} parent=0 // pred_check
    _
  $region34: #{tpu_custom_call.1} parent=0 // pred_check_branch
    %687 = sbr.rel (0) target = $region36
  $region35: #{tpu_custom_call.1} parent=0 // pred_region
    loop: start=0, step=1, limit=1
    $region37: #{tpu_custom_call.1} parent=35 // loop_pre_header
      _
    $region38: #{tpu_custom_call.1} parent=35 // loop_header
      %s689 = sphi 0, %s693
      %p690 = scmp.ge.s32.totalorder %s689, 1
      %s694 = sphi %s3, %s3
      %s695 = sphi [#allocation2], [#allocation2]
    $region39: #{tpu_custom_call.1} parent=35 // loop_header_branch
      %692 = sbr.rel (%p690) target = $region43
    $region40: #{tpu_custom_call.1} parent=35 // loop_body
      %v696 = vld [vmem:[%s694] sm:$0xff]
      %697 = vst [vmem:[%s695] sm:$0xff] %v696
      %v698 = vld [vmem:[%s694 + $0x8] sm:$0xff]
      %699 = vst [vmem:[%s695 + $0x8] sm:$0xff] %v698
      %v700 = vld [vmem:[%s694 + $0x10] sm:$0xff]
      %701 = vst [vmem:[%s695 + $0x10] sm:$0xff] %v700
    $region41: #{tpu_custom_call.1} parent=35 // loop_footer
      %s693 = sadd.s32 1, %s689
    $region42: #{tpu_custom_call.1} parent=35 // loop_footer_branch
      %688 = sbr.rel target = $region38
    $region43: #{tpu_custom_call.1} parent=35 // loop_exit
      _
  $region36: #{tpu_custom_call.1} parent=0 // pred_fallthru
    _
  // Predicated region
  $region44: #{tpu_custom_call.1} parent=0 // pred_check
    _
  $region45: #{tpu_custom_call.1} parent=0 // pred_check_branch
    %703 = sbr.rel target = $region47
  $region46: #{tpu_custom_call.1} parent=0 // pred_region
    _
  $region47: #{tpu_custom_call.1} parent=0 // pred_fallthru
    _
  // Predicated region
  $region48: #{tpu_custom_call.1} parent=0 // pred_check
    _
  $region49: #{tpu_custom_call.1} parent=0 // pred_check_branch
    %706 = sbr.rel (0) target = $region51
  $region50: #{tpu_custom_call.1} parent=0 // pred_region
    %707 = vsyncadd [#allocation3], 384
  $region51: #{tpu_custom_call.1} parent=0 // pred_fallthru
    _
  %s708 = sshll.u32 %s247, 4
  %709 = dma.done [#allocation3], %s708
  %v710 = vld [vmem:[#allocation2] sm:$0xff]
  %v711 = vld [vmem:[#allocation2 + $0x8] sm:$0xff]
  %v712 = vld [vmem:[#allocation2 + $0x10] sm:$0xff]
  %v713 = vunpack.c.0.s8 %v710
  %v714 = vunpack.c.1.s8 %v710
  %v715 = vunpack.c.2.s8 %v710
  %v716 = vunpack.c.3.s8 %v710
  %v717 = vunpack.c.0.s8 %v711
  %v718 = vunpack.c.1.s8 %v711
  %v719 = vunpack.c.2.s8 %v711
  %v720 = vunpack.c.3.s8 %v711
  %v721 = vunpack.c.0.s8 %v712
  %v722 = vunpack.c.1.s8 %v712
  %v723 = vunpack.c.2.s8 %v712
  %v724 = vunpack.c.3.s8 %v712
  %v725 = vcvt.s32.f32 %v713
  %v726 = vcvt.s32.f32 %v714
  %v727 = vcvt.s32.f32 %v715
  %v728 = vcvt.s32.f32 %v716
  %v729 = vcvt.s32.f32 %v717
  %v730 = vcvt.s32.f32 %v718
  %v731 = vcvt.s32.f32 %v719
  %v732 = vcvt.s32.f32 %v720
  %v733 = vcvt.s32.f32 %v721
  %v734 = vcvt.s32.f32 %v722
  %v735 = vcvt.s32.f32 %v723
  %v736 = vcvt.s32.f32 %v724
  %v737 = vpack.c.bf16 %v726, %v725
  %v738 = vpack.c.bf16 %v728, %v727
  %v739 = vpack.c.bf16 %v730, %v729
  %v740 = vpack.c.bf16 %v732, %v731
  %v741 = vpack.c.bf16 %v734, %v733
  %v742 = vpack.c.bf16 %v736, %v735
  %v744 = vsel %vm283, %v737, 0
  %v747 = vsel %vm283, %v738, 0
  %v750 = vsel %vm283, %v739, 0
  %v753 = vsel %vm283, %v740, 0
  %v756 = vsel %vm283, %v741, 0
  %v759 = vsel %vm283, %v742, 0
  %761 = vmatpush.bf16.msra.mxu0 0
  %762 = vmatpush.bf16.msra.mxu0 0
  %763 = vmatpush.bf16.msra.mxu0 %v685
  %764 = vmatpush.bf16.msra.mxu0 %v684
  %765 = vmatpush.bf16.msra.mxu0 %v683
  %766 = vmatpush.bf16.msra.mxu0 %v682
  %767 = vmatpush.bf16.msra.mxu0 %v681
  %768 = vmatpush.bf16.msra.mxu0 %v680
  %769 = vmatmul.bf16.gmra.mxu0 %v744
  %v770 = vpop.f32.mrf.mxu0
  %v771 = vadd.f32 0.0, %v770
  %v772 = vpop.f32.mrf.mxu0
  %v773 = vadd.f32 0.0, %v772
  %774 = vmatmul.bf16.gmra.mxu0 %v747
  %v775 = vpop.f32.mrf.mxu0
  %v776 = vadd.f32 0.0, %v775
  %v777 = vpop.f32.mrf.mxu0
  %v778 = vadd.f32 0.0, %v777
  %779 = vmatmul.bf16.gmra.mxu0 %v750
  %v780 = vpop.f32.mrf.mxu0
  %v781 = vadd.f32 0.0, %v780
  %v782 = vpop.f32.mrf.mxu0
  %v783 = vadd.f32 0.0, %v782
  %784 = vmatmul.bf16.gmra.mxu0 %v753
  %v785 = vpop.f32.mrf.mxu0
  %v786 = vadd.f32 0.0, %v785
  %v787 = vpop.f32.mrf.mxu0
  %v788 = vadd.f32 0.0, %v787
  %789 = vmatmul.bf16.gmra.mxu0 %v756
  %v790 = vpop.f32.mrf.mxu0
  %v791 = vadd.f32 0.0, %v790
  %v792 = vpop.f32.mrf.mxu0
  %v793 = vadd.f32 0.0, %v792
  %794 = vmatmul.bf16.gmra.mxu0 %v759
  %v795 = vpop.f32.mrf.mxu0
  %v796 = vadd.f32 0.0, %v795
  %v797 = vpop.f32.mrf.mxu0
  %v798 = vadd.f32 0.0, %v797
  %799 = vdwg.mxu0
  %800 = vst.msk [vmem:[#allocation4] sm:$0xff] %vm341, %v771
  %801 = vst.msk [vmem:[#allocation4 + $0x8] sm:$0xff] %vm341, %v773
  %802 = vst.msk [vmem:[#allocation4 + $0x10] sm:$0xff] %vm341, %v776
  %803 = vst.msk [vmem:[#allocation4 + $0x18] sm:$0xff] %vm341, %v778
  %804 = vst.msk [vmem:[#allocation4 + $0x20] sm:$0xff] %vm341, %v781
  %805 = vst.msk [vmem:[#allocation4 + $0x28] sm:$0xff] %vm341, %v783
  %806 = vst.msk [vmem:[#allocation4 + $0x30] sm:$0xff] %vm341, %v786
  %807 = vst.msk [vmem:[#allocation4 + $0x38] sm:$0xff] %vm341, %v788
  %808 = vst.msk [vmem:[#allocation4 + $0x40] sm:$0xff] %vm341, %v791
  %809 = vst.msk [vmem:[#allocation4 + $0x48] sm:$0xff] %vm341, %v793
  %810 = vst.msk [vmem:[#allocation4 + $0x50] sm:$0xff] %vm341, %v796
  %811 = vst.msk [vmem:[#allocation4 + $0x58] sm:$0xff] %vm341, %v798
  %v812 = vld [vmem:[#allocation4] sm:$0xff]
  %v813 = vld [vmem:[#allocation4 + $0x8] sm:$0xff]
  %v814 = vld [vmem:[#allocation4 + $0x10] sm:$0xff]
  %v815 = vld [vmem:[#allocation4 + $0x18] sm:$0xff]
  %v816 = vld [vmem:[#allocation4 + $0x20] sm:$0xff]
  %v817 = vld [vmem:[#allocation4 + $0x28] sm:$0xff]
  %v818 = vld [vmem:[#allocation4 + $0x30] sm:$0xff]
  %v819 = vld [vmem:[#allocation4 + $0x38] sm:$0xff]
  %v820 = vld [vmem:[#allocation4 + $0x40] sm:$0xff]
  %v821 = vld [vmem:[#allocation4 + $0x48] sm:$0xff]
  %v822 = vld [vmem:[#allocation4 + $0x50] sm:$0xff]
  %v823 = vld [vmem:[#allocation4 + $0x58] sm:$0xff]
  %v824 = vmul.f32 %v368, %v812
  %v825 = vmul.f32 %v372, %v813
  %v826 = vmul.f32 %v376, %v814
  %v827 = vmul.f32 %v380, %v815
  %v828 = vmul.f32 %v384, %v816
  %v829 = vmul.f32 %v388, %v817
  %v830 = vmul.f32 %v392, %v818
  %v831 = vmul.f32 %v396, %v819
  %v832 = vmul.f32 %v400, %v820
  %v833 = vmul.f32 %v404, %v821
  %v834 = vmul.f32 %v408, %v822
  %v835 = vmul.f32 %v412, %v823
  %v836 = vperm.slane %v34, 0
  %v838 = vsel %vm341, %v824, 0
  %v841 = vsel %vm341, %v825, 0
  %v844 = vsel %vm341, %v826, 0
  %v847 = vsel %vm341, %v827, 0
  %v850 = vsel %vm341, %v828, 0
  %v853 = vsel %vm341, %v829, 0
  %v856 = vsel %vm341, %v830, 0
  %v859 = vsel %vm341, %v831, 0
  %v862 = vsel %vm341, %v832, 0
  %v865 = vsel %vm341, %v833, 0
  %v868 = vsel %vm341, %v834, 0
  %v871 = vsel %vm341, %v835, 0
  %873 = vmatpush.msra.mxu0 0.0
  %874 = vmatpush.msra.mxu0 0.0
  %875 = vmatpush.msra.mxu0 0.0
  %876 = vmatpush.msra.mxu0 0.0
  %877 = vmatpush.msra.mxu0 0.0
  %878 = vmatpush.msra.mxu0 0.0
  %879 = vmatpush.msra.mxu0 0.0
  %880 = vmatpush.msra.mxu0 0.0
  %881 = vmatpush.msra.mxu0 0.0
  %882 = vmatpush.msra.mxu0 0.0
  %883 = vmatpush.msra.mxu0 0.0
  %884 = vmatpush.msra.mxu0 0.0
  %885 = vmatpush.msra.mxu0 0.0
  %886 = vmatpush.msra.mxu0 0.0
  %887 = vmatpush.msra.mxu0 %v30
  %888 = vmatpush.msra.mxu0 %v29
  %889 = vmatmul.f32.gmra.mxu0 %v838
  %v890 = vpop.f32.mrf.mxu0
  %v891 = vadd.f32 %v836, %v890
  %892 = vmatmul.f32.gmra.mxu0 %v841
  %v893 = vpop.f32.mrf.mxu0
  %v894 = vadd.f32 %v836, %v893
  %895 = vmatmul.f32.gmra.mxu0 %v844
  %v896 = vpop.f32.mrf.mxu0
  %v897 = vadd.f32 %v836, %v896
  %898 = vmatmul.f32.gmra.mxu0 %v847
  %v899 = vpop.f32.mrf.mxu0
  %v900 = vadd.f32 %v836, %v899
  %901 = vmatmul.f32.gmra.mxu0 %v850
  %v902 = vpop.f32.mrf.mxu0
  %v903 = vadd.f32 %v836, %v902
  %904 = vmatmul.f32.gmra.mxu0 %v853
  %v905 = vpop.f32.mrf.mxu0
  %v906 = vadd.f32 %v836, %v905
  %907 = vmatmul.f32.gmra.mxu0 %v856
  %v908 = vpop.f32.mrf.mxu0
  %v909 = vadd.f32 %v836, %v908
  %910 = vmatmul.f32.gmra.mxu0 %v859
  %v911 = vpop.f32.mrf.mxu0
  %v912 = vadd.f32 %v836, %v911
  %913 = vmatmul.f32.gmra.mxu0 %v862
  %v914 = vpop.f32.mrf.mxu0
  %v915 = vadd.f32 %v836, %v914
  %916 = vmatmul.f32.gmra.mxu0 %v865
  %v917 = vpop.f32.mrf.mxu0
  %v918 = vadd.f32 %v836, %v917
  %919 = vmatmul.f32.gmra.mxu0 %v868
  %v920 = vpop.f32.mrf.mxu0
  %v921 = vadd.f32 %v836, %v920
  %922 = vmatmul.f32.gmra.mxu0 %v871
  %v923 = vpop.f32.mrf.mxu0
  %v924 = vadd.f32 %v836, %v923
  %925 = vdwg.mxu0
  %v926 = vmul.f32 %v891, %v441
  %v927 = vmul.f32 %v894, %v445
  %v928 = vmul.f32 %v897, %v449
  %v929 = vmul.f32 %v900, %v453
  %v930 = vmul.f32 %v903, %v457
  %v931 = vmul.f32 %v906, %v461
  %v932 = vmul.f32 %v909, %v465
  %v933 = vmul.f32 %v912, %v469
  %v934 = vmul.f32 %v915, %v473
  %v935 = vmul.f32 %v918, %v477
  %v936 = vmul.f32 %v921, %v481
  %v937 = vmul.f32 %v924, %v485
  %v938 = vmul.f32 %v926, %v73
  %v939 = vmul.f32 %v927, %v74
  %v940 = vmul.f32 %v928, %v75
  %v941 = vmul.f32 %v929, %v76
  %v942 = vmul.f32 %v930, %v77
  %v943 = vmul.f32 %v931, %v78
  %v944 = vmul.f32 %v932, %v79
  %v945 = vmul.f32 %v933, %v80
  %v946 = vmul.f32 %v934, %v81
  %v947 = vmul.f32 %v935, %v82
  %v948 = vmul.f32 %v936, %v83
  %v949 = vmul.f32 %v937, %v84
  %v950 = vsel %vm341, %v938, 0.0
  %v951 = vsel %vm341, %v939, 0.0
  %v952 = vadd.f32 %v950, %v951
  %v953 = vsel %vm341, %v940, 0.0
  %v954 = vadd.f32 %v952, %v953
  %v955 = vsel %vm341, %v941, 0.0
  %v956 = vadd.f32 %v954, %v955
  %v957 = vsel %vm341, %v942, 0.0
  %v958 = vadd.f32 %v956, %v957
  %v959 = vsel %vm341, %v943, 0.0
  %v960 = vadd.f32 %v958, %v959
  %v961 = vsel %vm341, %v944, 0.0
  %v962 = vadd.f32 %v960, %v961
  %v963 = vsel %vm341, %v945, 0.0
  %v964 = vadd.f32 %v962, %v963
  %v965 = vsel %vm341, %v946, 0.0
  %v966 = vadd.f32 %v964, %v965
  %v967 = vsel %vm341, %v947, 0.0
  %v968 = vadd.f32 %v966, %v967
  %v969 = vsel %vm341, %v948, 0.0
  %v970 = vadd.f32 %v968, %v969
  %v971 = vsel %vm341, %v949, 0.0
  %v972 = vadd.f32 %v970, %v971
  %v973 = vrot.slane %v972, 4
  %v974 = vadd.f32 %v972, %v973
  %v975 = vrot.slane %v974, 2
  %v976 = vadd.f32 %v974, %v975
  %v977 = vrot.slane %v976, 1
  %v978 = vadd.f32 %v976, %v977
  %v979 = vmul.f32 %v978, 0.013333334
  %v980 = vsub.f32 %v926, %v979
  %v981 = vsub.f32 %v927, %v979
  %v982 = vsub.f32 %v928, %v979
  %v983 = vsub.f32 %v929, %v979
  %v984 = vsub.f32 %v930, %v979
  %v985 = vsub.f32 %v931, %v979
  %v986 = vsub.f32 %v932, %v979
  %v987 = vsub.f32 %v933, %v979
  %v988 = vsub.f32 %v934, %v979
  %v989 = vsub.f32 %v935, %v979
  %v990 = vsub.f32 %v936, %v979
  %v991 = vsub.f32 %v937, %v979
  %v992 = vmul.f32 %v980, %v980
  %v993 = vmul.f32 %v981, %v981
  %v994 = vmul.f32 %v982, %v982
  %v995 = vmul.f32 %v983, %v983
  %v996 = vmul.f32 %v984, %v984
  %v997 = vmul.f32 %v985, %v985
  %v998 = vmul.f32 %v986, %v986
  %v999 = vmul.f32 %v987, %v987
  %v1000 = vmul.f32 %v988, %v988
  %v1001 = vmul.f32 %v989, %v989
  %v1002 = vmul.f32 %v990, %v990
  %v1003 = vmul.f32 %v991, %v991
  %v1004 = vmul.f32 %v992, %v73
  %v1005 = vmul.f32 %v993, %v74
  %v1006 = vmul.f32 %v994, %v75
  %v1007 = vmul.f32 %v995, %v76
  %v1008 = vmul.f32 %v996, %v77
  %v1009 = vmul.f32 %v997, %v78
  %v1010 = vmul.f32 %v998, %v79
  %v1011 = vmul.f32 %v999, %v80
  %v1012 = vmul.f32 %v1000, %v81
  %v1013 = vmul.f32 %v1001, %v82
  %v1014 = vmul.f32 %v1002, %v83
  %v1015 = vmul.f32 %v1003, %v84
  %v1016 = vsel %vm341, %v1004, 0.0
  %v1017 = vsel %vm341, %v1005, 0.0
  %v1018 = vadd.f32 %v1016, %v1017
  %v1019 = vsel %vm341, %v1006, 0.0
  %v1020 = vadd.f32 %v1018, %v1019
  %v1021 = vsel %vm341, %v1007, 0.0
  %v1022 = vadd.f32 %v1020, %v1021
  %v1023 = vsel %vm341, %v1008, 0.0
  %v1024 = vadd.f32 %v1022, %v1023
  %v1025 = vsel %vm341, %v1009, 0.0
  %v1026 = vadd.f32 %v1024, %v1025
  %v1027 = vsel %vm341, %v1010, 0.0
  %v1028 = vadd.f32 %v1026, %v1027
  %v1029 = vsel %vm341, %v1011, 0.0
  %v1030 = vadd.f32 %v1028, %v1029
  %v1031 = vsel %vm341, %v1012, 0.0
  %v1032 = vadd.f32 %v1030, %v1031
  %v1033 = vsel %vm341, %v1013, 0.0
  %v1034 = vadd.f32 %v1032, %v1033
  %v1035 = vsel %vm341, %v1014, 0.0
  %v1036 = vadd.f32 %v1034, %v1035
  %v1037 = vsel %vm341, %v1015, 0.0
  %v1038 = vadd.f32 %v1036, %v1037
  %v1039 = vrot.slane %v1038, 4
  %v1040 = vadd.f32 %v1038, %v1039
  %v1041 = vrot.slane %v1040, 2
  %v1042 = vadd.f32 %v1040, %v1041
  %v1043 = vrot.slane %v1042, 1
  %v1044 = vadd.f32 %v1042, %v1043
  %v1045 = vmul.f32 %v1044, 0.013333334
  %v1046 = vperm.slane %v34, 1
  %v1047 = vmul.f32 %v1046, %v980
  %v1048 = vmul.f32 %v1046, %v981
  %v1049 = vmul.f32 %v1046, %v982
  %v1050 = vmul.f32 %v1046, %v983
  %v1051 = vmul.f32 %v1046, %v984
  %v1052 = vmul.f32 %v1046, %v985
  %v1053 = vmul.f32 %v1046, %v986
  %v1054 = vmul.f32 %v1046, %v987
  %v1055 = vmul.f32 %v1046, %v988
  %v1056 = vmul.f32 %v1046, %v989
  %v1057 = vmul.f32 %v1046, %v990
  %v1058 = vmul.f32 %v1046, %v991
  %v1059 = vadd.f32 %v1045, 1e-05
  %v1060 = vrsqrt.pop %v1059
  %v1061 = vmul.f32 %v1060, %v1059
  %v1062 = vmul.f32 %v1061, %v1060
  %v1063 = vmul.f32 0.5, %v1062
  %v1064 = vsub.f32 1.5, %v1063
  %v1065 = vmul.f32 %v1060, %v1064
  %vm1066 = vweird.f32 %v1059
  %vm1067 = vweird.f32 %v1060
  %vm1068 = vmor %vm1066, %vm1067
  %v1069 = vsel %vm1068, %v1060, %v1065
  %v1070 = vmul.f32 %v1047, %v1069
  %v1071 = vmul.f32 %v1048, %v1069
  %v1072 = vmul.f32 %v1049, %v1069
  %v1073 = vmul.f32 %v1050, %v1069
  %v1074 = vmul.f32 %v1051, %v1069
  %v1075 = vmul.f32 %v1052, %v1069
  %v1076 = vmul.f32 %v1053, %v1069
  %v1077 = vmul.f32 %v1054, %v1069
  %v1078 = vmul.f32 %v1055, %v1069
  %v1079 = vmul.f32 %v1056, %v1069
  %v1080 = vmul.f32 %v1057, %v1069
  %v1081 = vmul.f32 %v1058, %v1069
  %v1082 = vperm.slane %v34, 2
  %v1083 = vadd.f32 %v1070, %v1082
  %v1084 = vadd.f32 %v1071, %v1082
  %v1085 = vadd.f32 %v1072, %v1082
  %v1086 = vadd.f32 %v1073, %v1082
  %v1087 = vadd.f32 %v1074, %v1082
  %v1088 = vadd.f32 %v1075, %v1082
  %v1089 = vadd.f32 %v1076, %v1082
  %v1090 = vadd.f32 %v1077, %v1082
  %v1091 = vadd.f32 %v1078, %v1082
  %v1092 = vadd.f32 %v1079, %v1082
  %v1093 = vadd.f32 %v1080, %v1082
  %v1094 = vadd.f32 %v1081, %v1082
  %v1095 = vmax.f32 %v1083, 0.0
  %v1096 = vmax.f32 %v1084, 0.0
  %v1097 = vmax.f32 %v1085, 0.0
  %v1098 = vmax.f32 %v1086, 0.0
  %v1099 = vmax.f32 %v1087, 0.0
  %v1100 = vmax.f32 %v1088, 0.0
  %v1101 = vmax.f32 %v1089, 0.0
  %v1102 = vmax.f32 %v1090, 0.0
  %v1103 = vmax.f32 %v1091, 0.0
  %v1104 = vmax.f32 %v1092, 0.0
  %v1105 = vmax.f32 %v1093, 0.0
  %v1106 = vmax.f32 %v1094, 0.0
  %v1107 = vadd.f32 %v656, %v1095
  %v1108 = vadd.f32 %v657, %v1096
  %v1109 = vadd.f32 %v658, %v1097
  %v1110 = vadd.f32 %v659, %v1098
  %v1111 = vadd.f32 %v660, %v1099
  %v1112 = vadd.f32 %v661, %v1100
  %v1113 = vadd.f32 %v662, %v1101
  %v1114 = vadd.f32 %v663, %v1102
  %v1115 = vadd.f32 %v664, %v1103
  %v1116 = vadd.f32 %v665, %v1104
  %v1117 = vadd.f32 %v666, %v1105
  %v1118 = vadd.f32 %v667, %v1106
  %v1119 = vmul.f32 %v1107, %v160
  %v1120 = vmul.f32 %v1108, %v164
  %v1121 = vmul.f32 %v1109, %v168
  %v1122 = vmul.f32 %v1110, %v172
  %v1123 = vmul.f32 %v1111, %v176
  %v1124 = vmul.f32 %v1112, %v180
  %v1125 = vmul.f32 %v1113, %v184
  %v1126 = vmul.f32 %v1114, %v188
  %v1127 = vmul.f32 %v1115, %v192
  %v1128 = vmul.f32 %v1116, %v196
  %v1129 = vmul.f32 %v1117, %v200
  %v1130 = vmul.f32 %v1118, %v204
  %v1131 = vpack.c.bf16 %v1120, %v1119
  %v1132 = vpack.c.bf16 %v1122, %v1121
  %v1133 = vpack.c.bf16 %v1124, %v1123
  %v1134 = vpack.c.bf16 %v1126, %v1125
  %v1135 = vpack.c.bf16 %v1128, %v1127
  %v1136 = vpack.c.bf16 %v1130, %v1129
  // Predicated region
  $region52: #{tpu_custom_call.1} parent=0 // pred_check
    _
  $region53: #{tpu_custom_call.1} parent=0 // pred_check_branch
    %1138 = sbr.rel (0) target = $region55
  $region54: #{tpu_custom_call.1} parent=0 // pred_region
    loop: start=0, step=1, limit=1
    $region56: #{tpu_custom_call.1} parent=54 // loop_pre_header
      _
    $region57: #{tpu_custom_call.1} parent=54 // loop_header
      %s1140 = sphi 0, %s1144
      %p1141 = scmp.ge.s32.totalorder %s1140, 1
      %s1145 = sphi %s3, %s3
      %s1146 = sphi [#allocation2], [#allocation2]
    $region58: #{tpu_custom_call.1} parent=54 // loop_header_branch
      %1143 = sbr.rel (%p1141) target = $region62
    $region59: #{tpu_custom_call.1} parent=54 // loop_body
      %v1147 = vld [vmem:[%s1145] sm:$0xff]
      %1148 = vst [vmem:[%s1146] sm:$0xff] %v1147
      %v1149 = vld [vmem:[%s1145 + $0x8] sm:$0xff]
      %1150 = vst [vmem:[%s1146 + $0x8] sm:$0xff] %v1149
      %v1151 = vld [vmem:[%s1145 + $0x10] sm:$0xff]
      %1152 = vst [vmem:[%s1146 + $0x10] sm:$0xff] %v1151
    $region60: #{tpu_custom_call.1} parent=54 // loop_footer
      %s1144 = sadd.s32 1, %s1140
    $region61: #{tpu_custom_call.1} parent=54 // loop_footer_branch
      %1139 = sbr.rel target = $region57
    $region62: #{tpu_custom_call.1} parent=54 // loop_exit
      _
  $region55: #{tpu_custom_call.1} parent=0 // pred_fallthru
    _
  // Predicated region
  $region63: #{tpu_custom_call.1} parent=0 // pred_check
    _
  $region64: #{tpu_custom_call.1} parent=0 // pred_check_branch
    %1154 = sbr.rel target = $region66
  $region65: #{tpu_custom_call.1} parent=0 // pred_region
    _
  $region66: #{tpu_custom_call.1} parent=0 // pred_fallthru
    _
  // Predicated region
  $region67: #{tpu_custom_call.1} parent=0 // pred_check
    _
  $region68: #{tpu_custom_call.1} parent=0 // pred_check_branch
    %1157 = sbr.rel (0) target = $region70
  $region69: #{tpu_custom_call.1} parent=0 // pred_region
    %1158 = vsyncadd [#allocation3], 384
  $region70: #{tpu_custom_call.1} parent=0 // pred_fallthru
    _
  %s1159 = sshll.u32 %s247, 4
  %1160 = dma.done [#allocation3], %s1159
  %v1161 = vld [vmem:[#allocation2] sm:$0xff]
  %v1162 = vld [vmem:[#allocation2 + $0x8] sm:$0xff]
  %v1163 = vld [vmem:[#allocation2 + $0x10] sm:$0xff]
  %v1164 = vunpack.c.0.s8 %v1161
  %v1165 = vunpack.c.1.s8 %v1161
  %v1166 = vunpack.c.2.s8 %v1161
  %v1167 = vunpack.c.3.s8 %v1161
  %v1168 = vunpack.c.0.s8 %v1162
  %v1169 = vunpack.c.1.s8 %v1162
  %v1170 = vunpack.c.2.s8 %v1162
  %v1171 = vunpack.c.3.s8 %v1162
  %v1172 = vunpack.c.0.s8 %v1163
  %v1173 = vunpack.c.1.s8 %v1163
  %v1174 = vunpack.c.2.s8 %v1163
  %v1175 = vunpack.c.3.s8 %v1163
  %v1176 = vcvt.s32.f32 %v1164
  %v1177 = vcvt.s32.f32 %v1165
  %v1178 = vcvt.s32.f32 %v1166
  %v1179 = vcvt.s32.f32 %v1167
  %v1180 = vcvt.s32.f32 %v1168
  %v1181 = vcvt.s32.f32 %v1169
  %v1182 = vcvt.s32.f32 %v1170
  %v1183 = vcvt.s32.f32 %v1171
  %v1184 = vcvt.s32.f32 %v1172
  %v1185 = vcvt.s32.f32 %v1173
  %v1186 = vcvt.s32.f32 %v1174
  %v1187 = vcvt.s32.f32 %v1175
  %v1188 = vpack.c.bf16 %v1177, %v1176
  %v1189 = vpack.c.bf16 %v1179, %v1178
  %v1190 = vpack.c.bf16 %v1181, %v1180
  %v1191 = vpack.c.bf16 %v1183, %v1182
  %v1192 = vpack.c.bf16 %v1185, %v1184
  %v1193 = vpack.c.bf16 %v1187, %v1186
  %v1195 = vsel %vm283, %v1188, 0
  %v1198 = vsel %vm283, %v1189, 0
  %v1201 = vsel %vm283, %v1190, 0
  %v1204 = vsel %vm283, %v1191, 0
  %v1207 = vsel %vm283, %v1192, 0
  %v1210 = vsel %vm283, %v1193, 0
  %1212 = vmatpush.bf16.msra.mxu0 0
  %1213 = vmatpush.bf16.msra.mxu0 0
  %1214 = vmatpush.bf16.msra.mxu0 %v1136
  %1215 = vmatpush.bf16.msra.mxu0 %v1135
  %1216 = vmatpush.bf16.msra.mxu0 %v1134
  %1217 = vmatpush.bf16.msra.mxu0 %v1133
  %1218 = vmatpush.bf16.msra.mxu0 %v1132
  %1219 = vmatpush.bf16.msra.mxu0 %v1131
  %1220 = vmatmul.bf16.gmra.mxu0 %v1195
  %v1221 = vpop.f32.mrf.mxu0
  %v1222 = vadd.f32 0.0, %v1221
  %v1223 = vpop.f32.mrf.mxu0
  %v1224 = vadd.f32 0.0, %v1223
  %1225 = vmatmul.bf16.gmra.mxu0 %v1198
  %v1226 = vpop.f32.mrf.mxu0
  %v1227 = vadd.f32 0.0, %v1226
  %v1228 = vpop.f32.mrf.mxu0
  %v1229 = vadd.f32 0.0, %v1228
  %1230 = vmatmul.bf16.gmra.mxu0 %v1201
  %v1231 = vpop.f32.mrf.mxu0
  %v1232 = vadd.f32 0.0, %v1231
  %v1233 = vpop.f32.mrf.mxu0
  %v1234 = vadd.f32 0.0, %v1233
  %1235 = vmatmul.bf16.gmra.mxu0 %v1204
  %v1236 = vpop.f32.mrf.mxu0
  %v1237 = vadd.f32 0.0, %v1236
  %v1238 = vpop.f32.mrf.mxu0
  %v1239 = vadd.f32 0.0, %v1238
  %1240 = vmatmul.bf16.gmra.mxu0 %v1207
  %v1241 = vpop.f32.mrf.mxu0
  %v1242 = vadd.f32 0.0, %v1241
  %v1243 = vpop.f32.mrf.mxu0
  %v1244 = vadd.f32 0.0, %v1243
  %1245 = vmatmul.bf16.gmra.mxu0 %v1210
  %v1246 = vpop.f32.mrf.mxu0
  %v1247 = vadd.f32 0.0, %v1246
  %v1248 = vpop.f32.mrf.mxu0
  %v1249 = vadd.f32 0.0, %v1248
  %1250 = vdwg.mxu0
  %1251 = vst.msk [vmem:[#allocation4] sm:$0xff] %vm341, %v1222
  %1252 = vst.msk [vmem:[#allocation4 + $0x8] sm:$0xff] %vm341, %v1224
  %1253 = vst.msk [vmem:[#allocation4 + $0x10] sm:$0xff] %vm341, %v1227
  %1254 = vst.msk [vmem:[#allocation4 + $0x18] sm:$0xff] %vm341, %v1229
  %1255 = vst.msk [vmem:[#allocation4 + $0x20] sm:$0xff] %vm341, %v1232
  %1256 = vst.msk [vmem:[#allocation4 + $0x28] sm:$0xff] %vm341, %v1234
  %1257 = vst.msk [vmem:[#allocation4 + $0x30] sm:$0xff] %vm341, %v1237
  %1258 = vst.msk [vmem:[#allocation4 + $0x38] sm:$0xff] %vm341, %v1239
  %1259 = vst.msk [vmem:[#allocation4 + $0x40] sm:$0xff] %vm341, %v1242
  %1260 = vst.msk [vmem:[#allocation4 + $0x48] sm:$0xff] %vm341, %v1244
  %1261 = vst.msk [vmem:[#allocation4 + $0x50] sm:$0xff] %vm341, %v1247
  %1262 = vst.msk [vmem:[#allocation4 + $0x58] sm:$0xff] %vm341, %v1249
  %v1263 = vld [vmem:[#allocation4] sm:$0xff]
  %v1264 = vld [vmem:[#allocation4 + $0x8] sm:$0xff]
  %v1265 = vld [vmem:[#allocation4 + $0x10] sm:$0xff]
  %v1266 = vld [vmem:[#allocation4 + $0x18] sm:$0xff]
  %v1267 = vld [vmem:[#allocation4 + $0x20] sm:$0xff]
  %v1268 = vld [vmem:[#allocation4 + $0x28] sm:$0xff]
  %v1269 = vld [vmem:[#allocation4 + $0x30] sm:$0xff]
  %v1270 = vld [vmem:[#allocation4 + $0x38] sm:$0xff]
  %v1271 = vld [vmem:[#allocation4 + $0x40] sm:$0xff]
  %v1272 = vld [vmem:[#allocation4 + $0x48] sm:$0xff]
  %v1273 = vld [vmem:[#allocation4 + $0x50] sm:$0xff]
  %v1274 = vld [vmem:[#allocation4 + $0x58] sm:$0xff]
  %v1275 = vmul.f32 %v368, %v1263
  %v1276 = vmul.f32 %v372, %v1264
  %v1277 = vmul.f32 %v376, %v1265
  %v1278 = vmul.f32 %v380, %v1266
  %v1279 = vmul.f32 %v384, %v1267
  %v1280 = vmul.f32 %v388, %v1268
  %v1281 = vmul.f32 %v392, %v1269
  %v1282 = vmul.f32 %v396, %v1270
  %v1283 = vmul.f32 %v400, %v1271
  %v1284 = vmul.f32 %v404, %v1272
  %v1285 = vmul.f32 %v408, %v1273
  %v1286 = vmul.f32 %v412, %v1274
  %v1287 = vperm.slane %v35, 0
  %v1289 = vsel %vm341, %v1275, 0
  %v1292 = vsel %vm341, %v1276, 0
  %v1295 = vsel %vm341, %v1277, 0
  %v1298 = vsel %vm341, %v1278, 0
  %v1301 = vsel %vm341, %v1279, 0
  %v1304 = vsel %vm341, %v1280, 0
  %v1307 = vsel %vm341, %v1281, 0
  %v1310 = vsel %vm341, %v1282, 0
  %v1313 = vsel %vm341, %v1283, 0
  %v1316 = vsel %vm341, %v1284, 0
  %v1319 = vsel %vm341, %v1285, 0
  %v1322 = vsel %vm341, %v1286, 0
  %1324 = vmatpush.msra.mxu0 0.0
  %1325 = vmatpush.msra.mxu0 0.0
  %1326 = vmatpush.msra.mxu0 0.0
  %1327 = vmatpush.msra.mxu0 0.0
  %1328 = vmatpush.msra.mxu0 0.0
  %1329 = vmatpush.msra.mxu0 0.0
  %1330 = vmatpush.msra.mxu0 0.0
  %1331 = vmatpush.msra.mxu0 0.0
  %1332 = vmatpush.msra.mxu0 0.0
  %1333 = vmatpush.msra.mxu0 0.0
  %1334 = vmatpush.msra.mxu0 0.0
  %1335 = vmatpush.msra.mxu0 0.0
  %1336 = vmatpush.msra.mxu0 0.0
  %1337 = vmatpush.msra.mxu0 0.0
  %1338 = vmatpush.msra.mxu0 %v32
  %1339 = vmatpush.msra.mxu0 %v31
  %1340 = vmatmul.f32.gmra.mxu0 %v1289
  %v1341 = vpop.f32.mrf.mxu0
  %v1342 = vadd.f32 %v1287, %v1341
  %1343 = vmatmul.f32.gmra.mxu0 %v1292
  %v1344 = vpop.f32.mrf.mxu0
  %v1345 = vadd.f32 %v1287, %v1344
  %1346 = vmatmul.f32.gmra.mxu0 %v1295
  %v1347 = vpop.f32.mrf.mxu0
  %v1348 = vadd.f32 %v1287, %v1347
  %1349 = vmatmul.f32.gmra.mxu0 %v1298
  %v1350 = vpop.f32.mrf.mxu0
  %v1351 = vadd.f32 %v1287, %v1350
  %1352 = vmatmul.f32.gmra.mxu0 %v1301
  %v1353 = vpop.f32.mrf.mxu0
  %v1354 = vadd.f32 %v1287, %v1353
  %1355 = vmatmul.f32.gmra.mxu0 %v1304
  %v1356 = vpop.f32.mrf.mxu0
  %v1357 = vadd.f32 %v1287, %v1356
  %1358 = vmatmul.f32.gmra.mxu0 %v1307
  %v1359 = vpop.f32.mrf.mxu0
  %v1360 = vadd.f32 %v1287, %v1359
  %1361 = vmatmul.f32.gmra.mxu0 %v1310
  %v1362 = vpop.f32.mrf.mxu0
  %v1363 = vadd.f32 %v1287, %v1362
  %1364 = vmatmul.f32.gmra.mxu0 %v1313
  %v1365 = vpop.f32.mrf.mxu0
  %v1366 = vadd.f32 %v1287, %v1365
  %1367 = vmatmul.f32.gmra.mxu0 %v1316
  %v1368 = vpop.f32.mrf.mxu0
  %v1369 = vadd.f32 %v1287, %v1368
  %1370 = vmatmul.f32.gmra.mxu0 %v1319
  %v1371 = vpop.f32.mrf.mxu0
  %v1372 = vadd.f32 %v1287, %v1371
  %1373 = vmatmul.f32.gmra.mxu0 %v1322
  %v1374 = vpop.f32.mrf.mxu0
  %v1375 = vadd.f32 %v1287, %v1374
  %1376 = vdwg.mxu0
  %v1377 = vmul.f32 %v1342, %v441
  %v1378 = vmul.f32 %v1345, %v445
  %v1379 = vmul.f32 %v1348, %v449
  %v1380 = vmul.f32 %v1351, %v453
  %v1381 = vmul.f32 %v1354, %v457
  %v1382 = vmul.f32 %v1357, %v461
  %v1383 = vmul.f32 %v1360, %v465
  %v1384 = vmul.f32 %v1363, %v469
  %v1385 = vmul.f32 %v1366, %v473
  %v1386 = vmul.f32 %v1369, %v477
  %v1387 = vmul.f32 %v1372, %v481
  %v1388 = vmul.f32 %v1375, %v485
  %v1389 = vmul.f32 %v1377, %v73
  %v1390 = vmul.f32 %v1378, %v74
  %v1391 = vmul.f32 %v1379, %v75
  %v1392 = vmul.f32 %v1380, %v76
  %v1393 = vmul.f32 %v1381, %v77
  %v1394 = vmul.f32 %v1382, %v78
  %v1395 = vmul.f32 %v1383, %v79
  %v1396 = vmul.f32 %v1384, %v80
  %v1397 = vmul.f32 %v1385, %v81
  %v1398 = vmul.f32 %v1386, %v82
  %v1399 = vmul.f32 %v1387, %v83
  %v1400 = vmul.f32 %v1388, %v84
  %v1401 = vsel %vm341, %v1389, 0.0
  %v1402 = vsel %vm341, %v1390, 0.0
  %v1403 = vadd.f32 %v1401, %v1402
  %v1404 = vsel %vm341, %v1391, 0.0
  %v1405 = vadd.f32 %v1403, %v1404
  %v1406 = vsel %vm341, %v1392, 0.0
  %v1407 = vadd.f32 %v1405, %v1406
  %v1408 = vsel %vm341, %v1393, 0.0
  %v1409 = vadd.f32 %v1407, %v1408
  %v1410 = vsel %vm341, %v1394, 0.0
  %v1411 = vadd.f32 %v1409, %v1410
  %v1412 = vsel %vm341, %v1395, 0.0
  %v1413 = vadd.f32 %v1411, %v1412
  %v1414 = vsel %vm341, %v1396, 0.0
  %v1415 = vadd.f32 %v1413, %v1414
  %v1416 = vsel %vm341, %v1397, 0.0
  %v1417 = vadd.f32 %v1415, %v1416
  %v1418 = vsel %vm341, %v1398, 0.0
  %v1419 = vadd.f32 %v1417, %v1418
  %v1420 = vsel %vm341, %v1399, 0.0
  %v1421 = vadd.f32 %v1419, %v1420
  %v1422 = vsel %vm341, %v1400, 0.0
  %v1423 = vadd.f32 %v1421, %v1422
  %v1424 = vrot.slane %v1423, 4
  %v1425 = vadd.f32 %v1423, %v1424
  %v1426 = vrot.slane %v1425, 2
  %v1427 = vadd.f32 %v1425, %v1426
  %v1428 = vrot.slane %v1427, 1
  %v1429 = vadd.f32 %v1427, %v1428
  %v1430 = vmul.f32 %v1429, 0.013333334
  %v1431 = vsub.f32 %v1377, %v1430
  %v1432 = vsub.f32 %v1378, %v1430
  %v1433 = vsub.f32 %v1379, %v1430
  %v1434 = vsub.f32 %v1380, %v1430
  %v1435 = vsub.f32 %v1381, %v1430
  %v1436 = vsub.f32 %v1382, %v1430
  %v1437 = vsub.f32 %v1383, %v1430
  %v1438 = vsub.f32 %v1384, %v1430
  %v1439 = vsub.f32 %v1385, %v1430
  %v1440 = vsub.f32 %v1386, %v1430
  %v1441 = vsub.f32 %v1387, %v1430
  %v1442 = vsub.f32 %v1388, %v1430
  %v1443 = vmul.f32 %v1431, %v1431
  %v1444 = vmul.f32 %v1432, %v1432
  %v1445 = vmul.f32 %v1433, %v1433
  %v1446 = vmul.f32 %v1434, %v1434
  %v1447 = vmul.f32 %v1435, %v1435
  %v1448 = vmul.f32 %v1436, %v1436
  %v1449 = vmul.f32 %v1437, %v1437
  %v1450 = vmul.f32 %v1438, %v1438
  %v1451 = vmul.f32 %v1439, %v1439
  %v1452 = vmul.f32 %v1440, %v1440
  %v1453 = vmul.f32 %v1441, %v1441
  %v1454 = vmul.f32 %v1442, %v1442
  %v1455 = vmul.f32 %v1443, %v73
  %v1456 = vmul.f32 %v1444, %v74
  %v1457 = vmul.f32 %v1445, %v75
  %v1458 = vmul.f32 %v1446, %v76
  %v1459 = vmul.f32 %v1447, %v77
  %v1460 = vmul.f32 %v1448, %v78
  %v1461 = vmul.f32 %v1449, %v79
  %v1462 = vmul.f32 %v1450, %v80
  %v1463 = vmul.f32 %v1451, %v81
  %v1464 = vmul.f32 %v1452, %v82
  %v1465 = vmul.f32 %v1453, %v83
  %v1466 = vmul.f32 %v1454, %v84
  %v1467 = vsel %vm341, %v1455, 0.0
  %v1468 = vsel %vm341, %v1456, 0.0
  %v1469 = vadd.f32 %v1467, %v1468
  %v1470 = vsel %vm341, %v1457, 0.0
  %v1471 = vadd.f32 %v1469, %v1470
  %v1472 = vsel %vm341, %v1458, 0.0
  %v1473 = vadd.f32 %v1471, %v1472
  %v1474 = vsel %vm341, %v1459, 0.0
  %v1475 = vadd.f32 %v1473, %v1474
  %v1476 = vsel %vm341, %v1460, 0.0
  %v1477 = vadd.f32 %v1475, %v1476
  %v1478 = vsel %vm341, %v1461, 0.0
  %v1479 = vadd.f32 %v1477, %v1478
  %v1480 = vsel %vm341, %v1462, 0.0
  %v1481 = vadd.f32 %v1479, %v1480
  %v1482 = vsel %vm341, %v1463, 0.0
  %v1483 = vadd.f32 %v1481, %v1482
  %v1484 = vsel %vm341, %v1464, 0.0
  %v1485 = vadd.f32 %v1483, %v1484
  %v1486 = vsel %vm341, %v1465, 0.0
  %v1487 = vadd.f32 %v1485, %v1486
  %v1488 = vsel %vm341, %v1466, 0.0
  %v1489 = vadd.f32 %v1487, %v1488
  %v1490 = vrot.slane %v1489, 4
  %v1491 = vadd.f32 %v1489, %v1490
  %v1492 = vrot.slane %v1491, 2
  %v1493 = vadd.f32 %v1491, %v1492
  %v1494 = vrot.slane %v1493, 1
  %v1495 = vadd.f32 %v1493, %v1494
  %v1496 = vmul.f32 %v1495, 0.013333334
  %v1497 = vperm.slane %v35, 1
  %v1498 = vmul.f32 %v1497, %v1431
  %v1499 = vmul.f32 %v1497, %v1432
  %v1500 = vmul.f32 %v1497, %v1433
  %v1501 = vmul.f32 %v1497, %v1434
  %v1502 = vmul.f32 %v1497, %v1435
  %v1503 = vmul.f32 %v1497, %v1436
  %v1504 = vmul.f32 %v1497, %v1437
  %v1505 = vmul.f32 %v1497, %v1438
  %v1506 = vmul.f32 %v1497, %v1439
  %v1507 = vmul.f32 %v1497, %v1440
  %v1508 = vmul.f32 %v1497, %v1441
  %v1509 = vmul.f32 %v1497, %v1442
  %v1510 = vadd.f32 %v1496, 1e-05
  %v1511 = vrsqrt.pop %v1510
  %v1512 = vmul.f32 %v1511, %v1510
  %v1513 = vmul.f32 %v1512, %v1511
  %v1514 = vmul.f32 0.5, %v1513
  %v1515 = vsub.f32 1.5, %v1514
  %v1516 = vmul.f32 %v1511, %v1515
  %vm1517 = vweird.f32 %v1510
  %vm1518 = vweird.f32 %v1511
  %vm1519 = vmor %vm1517, %vm1518
  %v1520 = vsel %vm1519, %v1511, %v1516
  %v1521 = vmul.f32 %v1498, %v1520
  %v1522 = vmul.f32 %v1499, %v1520
  %v1523 = vmul.f32 %v1500, %v1520
  %v1524 = vmul.f32 %v1501, %v1520
  %v1525 = vmul.f32 %v1502, %v1520
  %v1526 = vmul.f32 %v1503, %v1520
  %v1527 = vmul.f32 %v1504, %v1520
  %v1528 = vmul.f32 %v1505, %v1520
  %v1529 = vmul.f32 %v1506, %v1520
  %v1530 = vmul.f32 %v1507, %v1520
  %v1531 = vmul.f32 %v1508, %v1520
  %v1532 = vmul.f32 %v1509, %v1520
  %v1533 = vperm.slane %v35, 2
  %v1534 = vadd.f32 %v1521, %v1533
  %v1535 = vadd.f32 %v1522, %v1533
  %v1536 = vadd.f32 %v1523, %v1533
  %v1537 = vadd.f32 %v1524, %v1533
  %v1538 = vadd.f32 %v1525, %v1533
  %v1539 = vadd.f32 %v1526, %v1533
  %v1540 = vadd.f32 %v1527, %v1533
  %v1541 = vadd.f32 %v1528, %v1533
  %v1542 = vadd.f32 %v1529, %v1533
  %v1543 = vadd.f32 %v1530, %v1533
  %v1544 = vadd.f32 %v1531, %v1533
  %v1545 = vadd.f32 %v1532, %v1533
  %v1546 = vadd.f32 %v656, %v1107
  %v1547 = vadd.f32 %v657, %v1108
  %v1548 = vadd.f32 %v658, %v1109
  %v1549 = vadd.f32 %v659, %v1110
  %v1550 = vadd.f32 %v660, %v1111
  %v1551 = vadd.f32 %v661, %v1112
  %v1552 = vadd.f32 %v662, %v1113
  %v1553 = vadd.f32 %v663, %v1114
  %v1554 = vadd.f32 %v664, %v1115
  %v1555 = vadd.f32 %v665, %v1116
  %v1556 = vadd.f32 %v666, %v1117
  %v1557 = vadd.f32 %v667, %v1118
  %v1558 = vsel %vm341, %v1546, 0.0
  %1559 = vadd.xlane.f32.xlu0 %v1558
  %v1560 = vpop.xlane.xlu0 %1559
  %v1561 = vsel %vm341, %v1547, 0.0
  %1562 = vadd.xlane.f32.xlu0 %v1561
  %v1563 = vpop.xlane.xlu0 %1562
  %v1564 = vsel %vm341, %v1548, 0.0
  %1565 = vadd.xlane.f32.xlu0 %v1564
  %v1566 = vpop.xlane.xlu0 %1565
  %v1567 = vsel %vm341, %v1549, 0.0
  %1568 = vadd.xlane.f32.xlu0 %v1567
  %v1569 = vpop.xlane.xlu0 %1568
  %v1570 = vsel %vm341, %v1550, 0.0
  %1571 = vadd.xlane.f32.xlu0 %v1570
  %v1572 = vpop.xlane.xlu0 %1571
  %v1573 = vsel %vm341, %v1551, 0.0
  %1574 = vadd.xlane.f32.xlu0 %v1573
  %v1575 = vpop.xlane.xlu0 %1574
  %v1576 = vsel %vm341, %v1552, 0.0
  %1577 = vadd.xlane.f32.xlu0 %v1576
  %v1578 = vpop.xlane.xlu0 %1577
  %v1579 = vsel %vm341, %v1553, 0.0
  %1580 = vadd.xlane.f32.xlu0 %v1579
  %v1581 = vpop.xlane.xlu0 %1580
  %v1582 = vsel %vm341, %v1554, 0.0
  %1583 = vadd.xlane.f32.xlu0 %v1582
  %v1584 = vpop.xlane.xlu0 %1583
  %v1585 = vsel %vm341, %v1555, 0.0
  %1586 = vadd.xlane.f32.xlu0 %v1585
  %v1587 = vpop.xlane.xlu0 %1586
  %v1588 = vsel %vm341, %v1556, 0.0
  %1589 = vadd.xlane.f32.xlu0 %v1588
  %v1590 = vpop.xlane.xlu0 %1589
  %v1591 = vsel %vm341, %v1557, 0.0
  %1592 = vadd.xlane.f32.xlu0 %v1591
  %v1593 = vpop.xlane.xlu0 %1592
  %v1594 = vmul.f32 %v1560, 0.0625
  %v1595 = vmul.f32 %v1563, 0.0625
  %v1596 = vmul.f32 %v1566, 0.0625
  %v1597 = vmul.f32 %v1569, 0.0625
  %v1598 = vmul.f32 %v1572, 0.0625
  %v1599 = vmul.f32 %v1575, 0.0625
  %v1600 = vmul.f32 %v1578, 0.0625
  %v1601 = vmul.f32 %v1581, 0.0625
  %v1602 = vmul.f32 %v1584, 0.0625
  %v1603 = vmul.f32 %v1587, 0.0625
  %v1604 = vmul.f32 %v1590, 0.0625
  %v1605 = vmul.f32 %v1593, 0.0625
  %v1606 = vadd.f32 %v16, %v1594
  %v1607 = vadd.f32 %v17, %v1595
  %v1608 = vadd.f32 %v18, %v1596
  %v1609 = vadd.f32 %v19, %v1597
  %v1610 = vadd.f32 %v20, %v1598
  %v1611 = vadd.f32 %v21, %v1599
  %v1612 = vadd.f32 %v22, %v1600
  %v1613 = vadd.f32 %v23, %v1601
  %v1614 = vadd.f32 %v24, %v1602
  %v1615 = vadd.f32 %v25, %v1603
  %v1616 = vadd.f32 %v26, %v1604
  %v1617 = vadd.f32 %v27, %v1605
  %v1618 = vadd.f32 %v1606, %v1534
  %v1619 = vadd.f32 %v1607, %v1535
  %v1620 = vadd.f32 %v1608, %v1536
  %v1621 = vadd.f32 %v1609, %v1537
  %v1622 = vadd.f32 %v1610, %v1538
  %v1623 = vadd.f32 %v1611, %v1539
  %v1624 = vadd.f32 %v1612, %v1540
  %v1625 = vadd.f32 %v1613, %v1541
  %v1626 = vadd.f32 %v1614, %v1542
  %v1627 = vadd.f32 %v1615, %v1543
  %v1628 = vadd.f32 %v1616, %v1544
  %v1629 = vadd.f32 %v1617, %v1545
  %v1630 = vmax.f32 %v1618, 0.0
  %v1631 = vmax.f32 %v1619, 0.0
  %v1632 = vmax.f32 %v1620, 0.0
  %v1633 = vmax.f32 %v1621, 0.0
  %v1634 = vmax.f32 %v1622, 0.0
  %v1635 = vmax.f32 %v1623, 0.0
  %v1636 = vmax.f32 %v1624, 0.0
  %v1637 = vmax.f32 %v1625, 0.0
  %v1638 = vmax.f32 %v1626, 0.0
  %v1639 = vmax.f32 %v1627, 0.0
  %v1640 = vmax.f32 %v1628, 0.0
  %v1641 = vmax.f32 %v1629, 0.0
  %vm1642 = vcmask 7168
  %1643 = vst.msk [vmem:[%s4] sm:$0xff] %vm1642, %v1630
  %1644 = vst.msk [vmem:[%s4 + $0x8] sm:$0xff] %vm1642, %v1631
  %1645 = vst.msk [vmem:[%s4 + $0x10] sm:$0xff] %vm1642, %v1632
  %1646 = vst.msk [vmem:[%s4 + $0x18] sm:$0xff] %vm1642, %v1633
  %1647 = vst.msk [vmem:[%s4 + $0x20] sm:$0xff] %vm1642, %v1634
  %1648 = vst.msk [vmem:[%s4 + $0x28] sm:$0xff] %vm1642, %v1635
  %1649 = vst.msk [vmem:[%s4 + $0x30] sm:$0xff] %vm1642, %v1636
  %1650 = vst.msk [vmem:[%s4 + $0x38] sm:$0xff] %vm1642, %v1637
  %1651 = vst.msk [vmem:[%s4 + $0x40] sm:$0xff] %vm1642, %v1638
  %1652 = vst.msk [vmem:[%s4 + $0x48] sm:$0xff] %vm1642, %v1639
  %1653 = vst.msk [vmem:[%s4 + $0x50] sm:$0xff] %vm1642, %v1640
  %1654 = vst.msk [vmem:[%s4 + $0x58] sm:$0xff] %vm1642, %v1641
  // Predicated region
  $region71: #{tpu_custom_call.1} parent=0 // pred_check
    _
  $region72: #{tpu_custom_call.1} parent=0 // pred_check_branch
    %1656 = sbr.rel (0) target = $region74
  $region73: #{tpu_custom_call.1} parent=0 // pred_region
    _
  $region74: #{tpu_custom_call.1} parent=0 // pred_fallthru
    _
  // Predicated region
  $region75: #{tpu_custom_call.1} parent=0 // pred_check
    _
  $region76: #{tpu_custom_call.1} parent=0 // pred_check_branch
    %1658 = sbr.rel (0) target = $region78
  $region77: #{tpu_custom_call.1} parent=0 // pred_region
    _
  $region78: #{tpu_custom_call.1} parent=0 // pred_fallthru
    _
  %1659 = vsyncmov [#allocation3]
  %s1660 = vpop.sfrf %1659
  %p1661 = scmp.eq.s32.totalorder %s1660, 0
  %p1662 = pneg %p1661
  %1664 = shalt.err (%p1662)
  %s1665 = scalar_lea.sflag [#allocation3], 1
  %1666 = vsyncmov %s1665
  %s1667 = vpop.sfrf %1666
  %p1668 = scmp.eq.s32.totalorder %s1667, 0
  %p1669 = pneg %p1668
  %1671 = shalt.err (%p1669)

</llo_original>
